<compile_context>
chip_gen: v7x
topology: tpu7x:2x2x1
jax: 0.10.0
libtpu: 0.0.40
codegen_flags: <defaults>
</compile_context>

<pallas_src>
import functools
import math

import jax
import jax.numpy as jnp
from jax.experimental import pallas as pl
from jax.experimental.pallas import tpu as pltpu

_HIGHEST = jax.lax.Precision.HIGHEST

_CHUNK = 512     # batch rows per inner step (bounds live vregs / spills)
_TB_CAP = 8192   # batch rows per grid step (VMEM cap, see header note)


def _round_up(n, m):
    return ((n + m - 1) // m) * m


def _choose_tb(B):
    """Rows per grid step (B >= 128 here).

    Always a multiple of 128 (keeps every in-kernel shape lane/sublane aligned)
    and never larger than the array; the last block may be partial.  For large
    B, an even number (>= 2) of steps so v7x's two TensorCores both get work.
    """
    max_tile = (B // 128) * 128
    if B <= 4096:
        # Latency regime: fewest steps (per-step fixed cost ~0.35 us).
        return min(max_tile, _TB_CAP)
    steps = max(2, 2 * pl.cdiv(B, 2 * _TB_CAP))          # even step count
    tb = _round_up(pl.cdiv(B, steps), _CHUNK)
    return max(_CHUNK, min(tb, _TB_CAP, max_tile))


def _make_mlp_kernel(tb, ch):
    """3-layer MLP over one (tb, 8) batch tile.

    HBM boundary uses the natural (batch, feature) layout; internal compute is
    feature-major (feature, batch) so matmuls / ReLUs are lane-dense.

    Parameter slab (32, 128) f32, resident in VMEM across the grid:
        [ 0:16, 0: 8]  W1 (16,  8)    [ 0:16, 32:33]  b1 (16, 1)
        [16:24, 0:16]  W2 ( 8, 16)    [16:24, 32:33]  b2 ( 8, 1)
        [24:32, 0: 8]  W3p( 8,  8)    [24:32, 32:33]  b3p( 8, 1)  (rows 4..7 zero)
    """
    n_chunks = tb // ch

    def kernel(p_ref, x_ref, o_ref):
        # Small static sub-tile views of the resident slab (hoisted out of the
        # chunk loop; loaded once per grid step).
        w1 = p_ref[0:16, 0:8]
        b1 = p_ref[0:16, 32:33]
        w2 = p_ref[16:24, 0:16]
        b2 = p_ref[16:24, 32:33]
        w3 = p_ref[24:32, 0:8]
        b3 = p_ref[24:32, 32:33]

        def do_chunk(r0):
            xc = x_ref[pl.ds(r0, ch), :]                       # (ch, 8) batch-major
            # Linear(8->16)+ReLU: h1 = relu(W1 @ xc^T + b1); contracting both
            # minor dims is the MXU-native A @ B^T form (no explicit transpose).
            h1 = jax.lax.dot_general(
                w1, xc, (((1,), (1,)), ((), ())),
                preferred_element_type=jnp.float32, precision=_HIGHEST) + b1
            h1 = jnp.maximum(h1, 0.0)                          # (16, ch)
            # Linear(16->8)+ReLU
            h2 = jnp.dot(w2, h1, preferred_element_type=jnp.float32,
                         precision=_HIGHEST) + b2
            h2 = jnp.maximum(h2, 0.0)                          # (8, ch)
            # Linear(8->4), padded to 8 output rows so the swap below is a clean
            # (8, ch) <-> (ch, 8) minor/second-minor transpose.
            y8t = jnp.dot(w3, h2, preferred_element_type=jnp.float32,
                          precision=_HIGHEST) + b3             # (8, ch)
            y = jnp.transpose(y8t)                             # (ch, 8) batch-major
            o_ref[pl.ds(r0, ch), :] = y[:, 0:4].astype(o_ref.dtype)

        if n_chunks == 1:
            do_chunk(0)
        else:
            def body(c, carry):
                do_chunk(pl.multiple_of(c * ch, ch))
                return carry
            jax.lax.fori_loop(0, n_chunks, body, 0)

    return kernel


def pack_params(params):
    """Pack PyTorch-layout params (W: (out,in), b: (out,)) into one (32, 128)
    f32 slab.  Call ONCE when the parameters are created/updated and pass the
    slab into net_forward (keeps the per-forward XLA op count minimal)."""
    w1, b1, w2, b2, w3, b3 = params
    slab = jnp.zeros((32, 128), jnp.float32)
    slab = slab.at[0:16, 0:8].set(w1)
    slab = slab.at[0:16, 32].set(b1)
    slab = slab.at[16:24, 0:16].set(w2)
    slab = slab.at[16:24, 32].set(b2)
    slab = slab.at[24:28, 0:8].set(w3)
    slab = slab.at[24:28, 32].set(b3)
    return slab


@functools.partial(jax.jit, static_argnames=("tb",))
def net_forward(x, slab, tb=None):
    """x: (B, 8) f32, slab: pack_params(...) -> (B, 4) f32."""
    orig_b = x.shape[0]
    if orig_b < 128:
        # Latency-trivial sizes: pad to one aligned 128-row tile so every
        # in-kernel shape stays lane/sublane aligned (negligible cost here;
        # batches >= 128 use cdiv grids with a partial last block instead).
        x = jnp.zeros((128, x.shape[1]), x.dtype).at[:orig_b, :].set(x)
    B = x.shape[0]

    if tb is None:
        tb = _choose_tb(B)
    assert tb % 128 == 0 and tb <= B, "tb must be a multiple of 128 and <= batch"
    ch = math.gcd(tb, _CHUNK)

    out = pl.pallas_call(
        _make_mlp_kernel(tb, ch),
        out_shape=jax.ShapeDtypeStruct((B, 4), jnp.float32),
        grid=(pl.cdiv(B, tb),),
        in_specs=[
            # Parameter slab: constant block index -> fetched once, resident.
            pl.BlockSpec((32, 128), lambda i: (0, 0)),
            # Input in its natural (batch, feature) layout; no wrapper transpose.
            pl.BlockSpec((tb, 8), lambda i: (i, 0)),
        ],
        # Output written directly as (batch, 4); no post-kernel slice/transpose.
        out_specs=pl.BlockSpec((tb, 4), lambda i: (i, 0)),
        compiler_params=pltpu.CompilerParams(
            dimension_semantics=("parallel",),
            # Natural-layout (tb, 8)/(tb, 4) f32 blocks are lane-padded to 128
            # in VMEM (~tb*512 B each, double-buffered) -> ~18 MiB at tb=8192,
            # above v5e's 16 MiB default scoped limit.
            vmem_limit_bytes=40 * 1024 * 1024,
        ),
    )(slab, x)

    if orig_b < 128:
        out = out[:orig_b]
    return out


def init_params(key):
    """Deterministic init mimicking PyTorch nn.Linear default
    (uniform(-1/sqrt(fan_in), 1/sqrt(fan_in))), weights stored (out, in)."""

    def linear(key, fan_in, fan_out):
        kw, kb = jax.random.split(key)
        bound = 1.0 / jnp.sqrt(fan_in)
        w = jax.random.uniform(kw, (fan_out, fan_in), jnp.float32, -bound, bound)
        b = jax.random.uniform(kb, (fan_out,), jnp.float32, -bound, bound)
        return w, b

    k1, k2, k3 = jax.random.split(key, 3)
    w1, b1 = linear(k1, 8, 16)
    w2, b2 = linear(k2, 16, 8)
    w3, b3 = linear(k3, 8, 4)
    return (w1, b1, w2, b2, w3, b3)


def net_forward_ref(x, params):
    """Pure-JAX reference (PyTorch layout: y = x @ W.T + b), same precision."""
    w1, b1, w2, b2, w3, b3 = params
    h = jnp.maximum(jnp.dot(x, w1.T, precision=_HIGHEST) + b1, 0.0)
    h = jnp.maximum(jnp.dot(h, w2.T, precision=_HIGHEST) + b2, 0.0)
    return jnp.dot(h, w3.T, precision=_HIGHEST) + b3


if __name__ == "__main__":
    key = jax.random.PRNGKey(0)
    kx, kp = jax.random.split(key)
    params = init_params(kp)
    slab = pack_params(params)   # packed once, outside the forward pass

    # 1) Small batch (module-native size): single tile.
    x = jax.random.normal(kx, (8, 8), jnp.float32)
    out = net_forward(x, slab)
    jax.block_until_ready(out)
    ref = net_forward_ref(x, params)
    assert out.shape == (8, 4)
    assert jnp.allclose(out, ref, atol=1e-5, rtol=1e-5)

    # 2) Unaligned batch with a forced small tile: 3 grid steps, partial last
    #    block, resident-parameter index map.
    x2 = jax.random.normal(kx, (300, 8), jnp.float32)
    out2 = net_forward(x2, slab, tb=128)
    jax.block_until_ready(out2)
    ref2 = net_forward_ref(x2, params)
    assert out2.shape == (300, 4)
    assert jnp.allclose(out2, ref2, atol=1e-5, rtol=1e-5)

    # 3) Default heuristic on a larger (still small) batch: 2 grid steps,
    #    3 inner 512-row chunks per step, partial last block.
    x3 = jax.random.normal(kx, (1600, 8), jnp.float32)
    out3 = net_forward(x3, slab)
    jax.block_until_ready(out3)
    ref3 = net_forward_ref(x3, params)
    assert out3.shape == (1600, 4)
    assert jnp.allclose(out3, ref3, atol=1e-5, rtol=1e-5)

    print("KERNEL_OK")
</pallas_src>

<mosaic_0001>
module attributes {stable_mosaic.version = 11 : i64} {
  func.func @kernel(%arg0: i32, %arg1: memref<32x128xf32, #tpu.memory_space<vmem>>, %arg2: memref<128x8xf32, #tpu.memory_space<vmem>>, %arg3: memref<128x4xf32, #tpu.memory_space<vmem>>) attributes {dimension_semantics = [#tpu.dimension_semantics<parallel>], iteration_bounds = array<i64: 1>, scalar_prefetch = 0 : i64, scratch_operands = 0 : i64, tpu.core_type = #tpu.core_type<tc>, window_params = [{pipeline_mode = #tpu.pipeline_mode<synchronous>, transform_indices = @transform_0, window_bounds = array<i64: 32, 128>}, {transform_indices = @transform_1, window_bounds = array<i64: 128, 8>}, {transform_indices = @transform_2, window_bounds = array<i64: 128, 4>}]} {
    %c0 = arith.constant 0 : index
    %c0_0 = arith.constant 0 : index
    %0 = vector.load %arg1[%c0, %c0_0] : memref<32x128xf32, #tpu.memory_space<vmem>>, vector<16x8xf32>
    %c0_1 = arith.constant 0 : index
    %c32 = arith.constant 32 : index
    %1 = vector.load %arg1[%c0_1, %c32] : memref<32x128xf32, #tpu.memory_space<vmem>>, vector<16x1xf32>
    %c16 = arith.constant 16 : index
    %c0_2 = arith.constant 0 : index
    %2 = vector.load %arg1[%c16, %c0_2] : memref<32x128xf32, #tpu.memory_space<vmem>>, vector<8x16xf32>
    %c16_3 = arith.constant 16 : index
    %c32_4 = arith.constant 32 : index
    %3 = vector.load %arg1[%c16_3, %c32_4] : memref<32x128xf32, #tpu.memory_space<vmem>>, vector<8x1xf32>
    %c24 = arith.constant 24 : index
    %c0_5 = arith.constant 0 : index
    %4 = vector.load %arg1[%c24, %c0_5] : memref<32x128xf32, #tpu.memory_space<vmem>>, vector<8x8xf32>
    %c24_6 = arith.constant 24 : index
    %c32_7 = arith.constant 32 : index
    %5 = vector.load %arg1[%c24_6, %c32_7] : memref<32x128xf32, #tpu.memory_space<vmem>>, vector<8x1xf32>
    %c0_8 = arith.constant 0 : index
    %c0_9 = arith.constant 0 : index
    %6 = vector.load %arg2[%c0_8, %c0_9] : memref<128x8xf32, #tpu.memory_space<vmem>>, vector<128x8xf32>
    %cst = arith.constant dense<0.000000e+00> : vector<16x128xf32>
    %7 = tpu.matmul %0, %6, %cst {dimension_numbers = #tpu.dot_dimension_numbers<[1], [1], [0], [0], [0, 0, 1, 0], [], []>, precision = #tpu.contract_precision<fp32>} : vector<16x8xf32>, vector<128x8xf32>, vector<16x128xf32> -> vector<16x128xf32>
    %8 = vector.broadcast %1 : vector<16x1xf32> to vector<16x128xf32>
    %9 = arith.addf %7, %8 : vector<16x128xf32>
    %cst_10 = arith.constant 0.000000e+00 : f32
    %10 = vector.broadcast %cst_10 : f32 to vector<16x128xf32>
    %11 = arith.maximumf %9, %10 : vector<16x128xf32>
    %cst_11 = arith.constant dense<0.000000e+00> : vector<8x128xf32>
    %12 = tpu.matmul %2, %11, %cst_11 {dimension_numbers = #tpu.dot_dimension_numbers<[1], [0], [0], [1], [0, 0, 1, 1], [], []>, precision = #tpu.contract_precision<fp32>} : vector<8x16xf32>, vector<16x128xf32>, vector<8x128xf32> -> vector<8x128xf32>
    %13 = vector.broadcast %3 : vector<8x1xf32> to vector<8x128xf32>
    %14 = arith.addf %12, %13 : vector<8x128xf32>
    %cst_12 = arith.constant 0.000000e+00 : f32
    %15 = vector.broadcast %cst_12 : f32 to vector<8x128xf32>
    %16 = arith.maximumf %14, %15 : vector<8x128xf32>
    %cst_13 = arith.constant dense<0.000000e+00> : vector<8x128xf32>
    %17 = tpu.matmul %4, %16, %cst_13 {dimension_numbers = #tpu.dot_dimension_numbers<[1], [0], [0], [1], [0, 0, 1, 1], [], []>, precision = #tpu.contract_precision<fp32>} : vector<8x8xf32>, vector<8x128xf32>, vector<8x128xf32> -> vector<8x128xf32>
    %18 = vector.broadcast %5 : vector<8x1xf32> to vector<8x128xf32>
    %19 = arith.addf %17, %18 : vector<8x128xf32>
    %20 = tpu.transpose %19, [1, 0] : vector<8x128xf32> -> vector<128x8xf32>
    %21 = vector.extract_strided_slice %20 {offsets = [0, 0], sizes = [128, 4], strides = [1, 1]} : vector<128x8xf32> to vector<128x4xf32>
    %c0_14 = arith.constant 0 : index
    %c0_15 = arith.constant 0 : index
    %22 = vector.load %arg3[%c0_14, %c0_15] : memref<128x4xf32, #tpu.memory_space<vmem>>, vector<128x4xf32>
    tpu.vector_store %arg3[%c0_14, %c0_15], %21 {strides = array<i32>} : memref<128x4xf32, #tpu.memory_space<vmem>>, vector<128x4xf32>,
    return
  }
  func.func @transform_0(%arg0: i32) -> (i32, i32) {
    %c0_i32 = arith.constant 0 : i32
    %c0_i32_0 = arith.constant 0 : i32
    %c0_i32_1 = arith.constant 0 : i32
    return %c0_i32, %c0_i32_0 : i32, i32
  }
  func.func @transform_1(%arg0: i32) -> (i32, i32) {
    %c0_i32 = arith.constant 0 : i32
    %c0_i32_0 = arith.constant 0 : i32
    return %arg0, %c0_i32 : i32, i32
  }
  func.func @transform_2(%arg0: i32) -> (i32, i32) {
    %c0_i32 = arith.constant 0 : i32
    %c0_i32_0 = arith.constant 0 : i32
    return %arg0, %c0_i32 : i32, i32
  }
}

</mosaic_0001>

<llo_original>
// kernel: net_forward.1
$region0: #{net_forward.1}
  #allocation0 [shape = 'u32[]', space=smem, size = 0x4, offset = 0x4, fixed_abs, tag = 'smem constant byte address 0x4 - core index']
  #allocation1 [shape = 'u32[144,128]{1,0:T(1,128)}', space=vmem, size = 0x12000, scoped, tag = 'internal scratch']
  %s0 = inlined_call_operand.vmem [shape: f32[32,128], index: 0, kind: input, shape index: {}]
  %s1 = inlined_call_operand.vmem [shape: f32[128,8], index: 1, kind: input, shape index: {}]
  %s2 = inlined_call_operand.vmem [shape: f32[128,4], index: 2, kind: output, shape index: {}]
  %s3 = sld [smem:[#allocation0]]
  $region18: #{net_forward.1} parent=0
    _
  %s5 = ssub.s32 1, %s3
  %s6 = scalar_select 0, %s5, %s3
  // Predicated region
  $region2: #{net_forward.1} parent=0 // pred_check
    _
  $region3: #{net_forward.1} parent=0 // pred_check_branch
    %8 = sbr.rel (0) target = $region5
  $region4: #{net_forward.1} parent=0 // pred_region
    _
  $region5: #{net_forward.1} parent=0 // pred_fallthru
    _
  // Predicated region
  $region6: #{net_forward.1} parent=0 // pred_check
    _
  $region7: #{net_forward.1} parent=0 // pred_check_branch
    %10 = sbr.rel (0) target = $region9
  $region8: #{net_forward.1} parent=0 // pred_region
    _
  $region9: #{net_forward.1} parent=0 // pred_fallthru
    _
  %v11 = vld [vmem:[%s0] sm:$0xff]
  %v12 = vld [vmem:[%s0 + $0x8] sm:$0xff]
  %v13 = vld [vmem:[%s0 + $0x10] sm:$0xff]
  %v14 = vld [vmem:[%s0 + $0x18] sm:$0xff]
  %v15 = vld [vmem:[%s1] sm:$0xff]
  %v16 = vld [vmem:[%s1 + $0x8] sm:$0xff]
  %v17 = vld [vmem:[%s1 + $0x10] sm:$0xff]
  %v18 = vld [vmem:[%s1 + $0x18] sm:$0xff]
  %v19 = vld [vmem:[%s1 + $0x20] sm:$0xff]
  %v20 = vld [vmem:[%s1 + $0x28] sm:$0xff]
  %v21 = vld [vmem:[%s1 + $0x30] sm:$0xff]
  %v22 = vld [vmem:[%s1 + $0x38] sm:$0xff]
  %v23 = vld [vmem:[%s1 + $0x40] sm:$0xff]
  %v24 = vld [vmem:[%s1 + $0x48] sm:$0xff]
  %v25 = vld [vmem:[%s1 + $0x50] sm:$0xff]
  %v26 = vld [vmem:[%s1 + $0x58] sm:$0xff]
  %v27 = vld [vmem:[%s1 + $0x60] sm:$0xff]
  %v28 = vld [vmem:[%s1 + $0x68] sm:$0xff]
  %v29 = vld [vmem:[%s1 + $0x70] sm:$0xff]
  %v30 = vld [vmem:[%s1 + $0x78] sm:$0xff]
  %32 = vset.pattern.permute.xlu0 32
  %33 = vperm.xlu0 %32, %v11
  %v34 = vpop.permute.xlu0 %33
  %37 = vset.pattern.permute.xlu0 32
  %38 = vperm.xlu0 %37, %v12
  %v39 = vpop.permute.xlu0 %38
  %vm41 = vcmask 64512
  %v42 = vsel %vm41, %v11, 0
  %v44 = vsel %vm41, %v12, 0
  %v47 = vsel %vm41, %v15, 0
  %v50 = vsel %vm41, %v16, 0
  %v53 = vsel %vm41, %v17, 0
  %v56 = vsel %vm41, %v18, 0
  %v59 = vsel %vm41, %v19, 0
  %v62 = vsel %vm41, %v20, 0
  %v65 = vsel %vm41, %v21, 0
  %v68 = vsel %vm41, %v22, 0
  %v71 = vsel %vm41, %v23, 0
  %v74 = vsel %vm41, %v24, 0
  %v77 = vsel %vm41, %v25, 0
  %v80 = vsel %vm41, %v26, 0
  %v83 = vsel %vm41, %v27, 0
  %v86 = vsel %vm41, %v28, 0
  %v89 = vsel %vm41, %v29, 0
  %v92 = vsel %vm41, %v30, 0
  %94 = vmatprep.subr.mxu0 0.0
  %v95 = vand.u32 %v47, 4294901760
  %96 = vmatpush1.xpose.msra.mxu0 %v95
  %97 = vmatprep.subr.mxu0 0.0
  %v98 = vand.u32 %v50, 4294901760
  %99 = vmatpush1.xpose.msra.mxu0 %v98
  %100 = vmatprep.subr.mxu0 0.0
  %v101 = vand.u32 %v53, 4294901760
  %102 = vmatpush1.xpose.msra.mxu0 %v101
  %103 = vmatprep.subr.mxu0 0.0
  %v104 = vand.u32 %v56, 4294901760
  %105 = vmatpush1.xpose.msra.mxu0 %v104
  %106 = vmatprep.subr.mxu0 0.0
  %v107 = vand.u32 %v59, 4294901760
  %108 = vmatpush1.xpose.msra.mxu0 %v107
  %109 = vmatprep.subr.mxu0 0.0
  %v110 = vand.u32 %v62, 4294901760
  %111 = vmatpush1.xpose.msra.mxu0 %v110
  %112 = vmatprep.subr.mxu0 0.0
  %v113 = vand.u32 %v65, 4294901760
  %114 = vmatpush1.xpose.msra.mxu0 %v113
  %115 = vmatprep.subr.mxu0 0.0
  %v116 = vand.u32 %v68, 4294901760
  %117 = vmatpush1.xpose.msra.mxu0 %v116
  %118 = vmatprep.subr.mxu0 0.0
  %v119 = vand.u32 %v71, 4294901760
  %120 = vmatpush1.xpose.msra.mxu0 %v119
  %121 = vmatprep.subr.mxu0 0.0
  %v122 = vand.u32 %v74, 4294901760
  %123 = vmatpush1.xpose.msra.mxu0 %v122
  %124 = vmatprep.subr.mxu0 0.0
  %v125 = vand.u32 %v77, 4294901760
  %126 = vmatpush1.xpose.msra.mxu0 %v125
  %127 = vmatprep.subr.mxu0 0.0
  %v128 = vand.u32 %v80, 4294901760
  %129 = vmatpush1.xpose.msra.mxu0 %v128
  %130 = vmatprep.subr.mxu0 0.0
  %v131 = vand.u32 %v83, 4294901760
  %132 = vmatpush1.xpose.msra.mxu0 %v131
  %133 = vmatprep.subr.mxu0 0.0
  %v134 = vand.u32 %v86, 4294901760
  %135 = vmatpush1.xpose.msra.mxu0 %v134
  %136 = vmatprep.subr.mxu0 0.0
  %v137 = vand.u32 %v89, 4294901760
  %138 = vmatpush1.xpose.msra.mxu0 %v137
  %139 = vmatprep.subr.mxu0 0.0
  %v140 = vand.u32 %v92, 4294901760
  %141 = vmatpush1.xpose.msra.mxu0 %v140
  %142 = vmatprep.subr.mxu0 0.0
  %143 = vmatpush1.xpose.msra.mxu0 0.0
  %144 = vmatprep.subr.mxu0 0.0
  %145 = vmatpush1.xpose.msra.mxu0 0.0
  %146 = vmatprep.subr.mxu0 0.0
  %147 = vmatpush1.xpose.msra.mxu0 0.0
  %148 = vmatprep.subr.mxu0 0.0
  %149 = vmatpush1.xpose.msra.mxu0 0.0
  %150 = vmatprep.subr.mxu0 0.0
  %151 = vmatpush1.xpose.msra.mxu0 0.0
  %152 = vmatprep.subr.mxu0 0.0
  %153 = vmatpush1.xpose.msra.mxu0 0.0
  %154 = vmatprep.subr.mxu0 0.0
  %155 = vmatpush1.xpose.msra.mxu0 0.0
  %156 = vmatprep.subr.mxu0 0.0
  %157 = vmatpush1.xpose.msra.mxu0 0.0
  %158 = vmatprep.subr.mxu0 0.0
  %159 = vmatpush1.xpose.msra.mxu0 0.0
  %160 = vmatprep.subr.mxu0 0.0
  %161 = vmatpush1.xpose.msra.mxu0 0.0
  %162 = vmatprep.subr.mxu0 0.0
  %163 = vmatpush1.xpose.msra.mxu0 0.0
  %164 = vmatprep.subr.mxu0 0.0
  %165 = vmatpush1.xpose.msra.mxu0 0.0
  %166 = vmatprep.subr.mxu0 0.0
  %167 = vmatpush1.xpose.msra.mxu0 0.0
  %168 = vmatprep.subr.mxu0 0.0
  %169 = vmatpush1.xpose.msra.mxu0 0.0
  %170 = vmatprep.subr.mxu0 0.0
  %171 = vmatpush1.xpose.msra.mxu0 0.0
  %172 = vmatprep.subr.mxu0 0.0
  %173 = vmatpush1.xpose.msra.mxu0 0.0
  %174 = vmatprep.mubr.f32.mxu0 0.0
  %v175 = vand.u32 %v42, 4294901760
  %v176 = vsub.f32 %v42, %v175
  %v177 = vand.u32 %v176, 4294901760
  %v178 = vsub.f32 %v176, %v177
  %v179 = vand.u32 %v178, 4294901760
  %180 = vmatmul.mubr.f32.gmra.mrb[0].mxu0 %v179
  %v181 = vpop.f32.mrb[0].mxu0
  %v182 = vadd.f32 %v34, %v181
  %v183 = vpop.f32.mrb[0].mxu0
  %184 = vmatprep.mubr.f32.mxu0 0.0
  %v185 = vand.u32 %v44, 4294901760
  %v186 = vsub.f32 %v44, %v185
  %v187 = vand.u32 %v186, 4294901760
  %v188 = vsub.f32 %v186, %v187
  %v189 = vand.u32 %v188, 4294901760
  %190 = vmatmul.mubr.f32.gmra.mrb[0].mxu0 %v189
  %v191 = vpop.f32.mrb[0].mxu0
  %v192 = vadd.f32 %v39, %v191
  %v193 = vpop.f32.mrb[0].mxu0
  %194 = vdwg.mxu0
  %195 = vmatprep.subr.mxu0 0.0
  %v196 = vand.u32 %v47, 4294901760
  %v197 = vsub.f32 %v47, %v196
  %v198 = vand.u32 %v197, 4294901760
  %v199 = vsub.f32 %v197, %v198
  %v200 = vand.u32 %v199, 4294901760
  %201 = vmatpush1.xpose.msra.mxu0 %v200
  %202 = vmatprep.subr.mxu0 0.0
  %v203 = vand.u32 %v50, 4294901760
  %v204 = vsub.f32 %v50, %v203
  %v205 = vand.u32 %v204, 4294901760
  %v206 = vsub.f32 %v204, %v205
  %v207 = vand.u32 %v206, 4294901760
  %208 = vmatpush1.xpose.msra.mxu0 %v207
  %209 = vmatprep.subr.mxu0 0.0
  %v210 = vand.u32 %v53, 4294901760
  %v211 = vsub.f32 %v53, %v210
  %v212 = vand.u32 %v211, 4294901760
  %v213 = vsub.f32 %v211, %v212
  %v214 = vand.u32 %v213, 4294901760
  %215 = vmatpush1.xpose.msra.mxu0 %v214
  %216 = vmatprep.subr.mxu0 0.0
  %v217 = vand.u32 %v56, 4294901760
  %v218 = vsub.f32 %v56, %v217
  %v219 = vand.u32 %v218, 4294901760
  %v220 = vsub.f32 %v218, %v219
  %v221 = vand.u32 %v220, 4294901760
  %222 = vmatpush1.xpose.msra.mxu0 %v221
  %223 = vmatprep.subr.mxu0 0.0
  %v224 = vand.u32 %v59, 4294901760
  %v225 = vsub.f32 %v59, %v224
  %v226 = vand.u32 %v225, 4294901760
  %v227 = vsub.f32 %v225, %v226
  %v228 = vand.u32 %v227, 4294901760
  %229 = vmatpush1.xpose.msra.mxu0 %v228
  %230 = vmatprep.subr.mxu0 0.0
  %v231 = vand.u32 %v62, 4294901760
  %v232 = vsub.f32 %v62, %v231
  %v233 = vand.u32 %v232, 4294901760
  %v234 = vsub.f32 %v232, %v233
  %v235 = vand.u32 %v234, 4294901760
  %236 = vmatpush1.xpose.msra.mxu0 %v235
  %237 = vmatprep.subr.mxu0 0.0
  %v238 = vand.u32 %v65, 4294901760
  %v239 = vsub.f32 %v65, %v238
  %v240 = vand.u32 %v239, 4294901760
  %v241 = vsub.f32 %v239, %v240
  %v242 = vand.u32 %v241, 4294901760
  %243 = vmatpush1.xpose.msra.mxu0 %v242
  %244 = vmatprep.subr.mxu0 0.0
  %v245 = vand.u32 %v68, 4294901760
  %v246 = vsub.f32 %v68, %v245
  %v247 = vand.u32 %v246, 4294901760
  %v248 = vsub.f32 %v246, %v247
  %v249 = vand.u32 %v248, 4294901760
  %250 = vmatpush1.xpose.msra.mxu0 %v249
  %251 = vmatprep.subr.mxu0 0.0
  %v252 = vand.u32 %v71, 4294901760
  %v253 = vsub.f32 %v71, %v252
  %v254 = vand.u32 %v253, 4294901760
  %v255 = vsub.f32 %v253, %v254
  %v256 = vand.u32 %v255, 4294901760
  %257 = vmatpush1.xpose.msra.mxu0 %v256
  %258 = vmatprep.subr.mxu0 0.0
  %v259 = vand.u32 %v74, 4294901760
  %v260 = vsub.f32 %v74, %v259
  %v261 = vand.u32 %v260, 4294901760
  %v262 = vsub.f32 %v260, %v261
  %v263 = vand.u32 %v262, 4294901760
  %264 = vmatpush1.xpose.msra.mxu0 %v263
  %265 = vmatprep.subr.mxu0 0.0
  %v266 = vand.u32 %v77, 4294901760
  %v267 = vsub.f32 %v77, %v266
  %v268 = vand.u32 %v267, 4294901760
  %v269 = vsub.f32 %v267, %v268
  %v270 = vand.u32 %v269, 4294901760
  %271 = vmatpush1.xpose.msra.mxu0 %v270
  %272 = vmatprep.subr.mxu0 0.0
  %v273 = vand.u32 %v80, 4294901760
  %v274 = vsub.f32 %v80, %v273
  %v275 = vand.u32 %v274, 4294901760
  %v276 = vsub.f32 %v274, %v275
  %v277 = vand.u32 %v276, 4294901760
  %278 = vmatpush1.xpose.msra.mxu0 %v277
  %279 = vmatprep.subr.mxu0 0.0
  %v280 = vand.u32 %v83, 4294901760
  %v281 = vsub.f32 %v83, %v280
  %v282 = vand.u32 %v281, 4294901760
  %v283 = vsub.f32 %v281, %v282
  %v284 = vand.u32 %v283, 4294901760
  %285 = vmatpush1.xpose.msra.mxu0 %v284
  %286 = vmatprep.subr.mxu0 0.0
  %v287 = vand.u32 %v86, 4294901760
  %v288 = vsub.f32 %v86, %v287
  %v289 = vand.u32 %v288, 4294901760
  %v290 = vsub.f32 %v288, %v289
  %v291 = vand.u32 %v290, 4294901760
  %292 = vmatpush1.xpose.msra.mxu0 %v291
  %293 = vmatprep.subr.mxu0 0.0
  %v294 = vand.u32 %v89, 4294901760
  %v295 = vsub.f32 %v89, %v294
  %v296 = vand.u32 %v295, 4294901760
  %v297 = vsub.f32 %v295, %v296
  %v298 = vand.u32 %v297, 4294901760
  %299 = vmatpush1.xpose.msra.mxu0 %v298
  %300 = vmatprep.subr.mxu0 0.0
  %v301 = vand.u32 %v92, 4294901760
  %v302 = vsub.f32 %v92, %v301
  %v303 = vand.u32 %v302, 4294901760
  %v304 = vsub.f32 %v302, %v303
  %v305 = vand.u32 %v304, 4294901760
  %306 = vmatpush1.xpose.msra.mxu0 %v305
  %307 = vmatprep.subr.mxu0 0.0
  %308 = vmatpush1.xpose.msra.mxu0 0.0
  %309 = vmatprep.subr.mxu0 0.0
  %310 = vmatpush1.xpose.msra.mxu0 0.0
  %311 = vmatprep.subr.mxu0 0.0
  %312 = vmatpush1.xpose.msra.mxu0 0.0
  %313 = vmatprep.subr.mxu0 0.0
  %314 = vmatpush1.xpose.msra.mxu0 0.0
  %315 = vmatprep.subr.mxu0 0.0
  %316 = vmatpush1.xpose.msra.mxu0 0.0
  %317 = vmatprep.subr.mxu0 0.0
  %318 = vmatpush1.xpose.msra.mxu0 0.0
  %319 = vmatprep.subr.mxu0 0.0
  %320 = vmatpush1.xpose.msra.mxu0 0.0
  %321 = vmatprep.subr.mxu0 0.0
  %322 = vmatpush1.xpose.msra.mxu0 0.0
  %323 = vmatprep.subr.mxu0 0.0
  %324 = vmatpush1.xpose.msra.mxu0 0.0
  %325 = vmatprep.subr.mxu0 0.0
  %326 = vmatpush1.xpose.msra.mxu0 0.0
  %327 = vmatprep.subr.mxu0 0.0
  %328 = vmatpush1.xpose.msra.mxu0 0.0
  %329 = vmatprep.subr.mxu0 0.0
  %330 = vmatpush1.xpose.msra.mxu0 0.0
  %331 = vmatprep.subr.mxu0 0.0
  %332 = vmatpush1.xpose.msra.mxu0 0.0
  %333 = vmatprep.subr.mxu0 0.0
  %334 = vmatpush1.xpose.msra.mxu0 0.0
  %335 = vmatprep.subr.mxu0 0.0
  %336 = vmatpush1.xpose.msra.mxu0 0.0
  %337 = vmatprep.subr.mxu0 0.0
  %338 = vmatpush1.xpose.msra.mxu0 0.0
  %339 = vmatprep.mubr.f32.mxu0 0.0
  %v340 = vand.u32 %v42, 4294901760
  %341 = vmatmul.mubr.f32.gmra.mrb[0].mxu0 %v340
  %v342 = vpop.f32.mrb[0].mxu0
  %v343 = vadd.f32 %v182, %v342
  %v344 = vpop.f32.mrb[0].mxu0
  %345 = vmatprep.mubr.f32.mxu0 0.0
  %v346 = vand.u32 %v44, 4294901760
  %347 = vmatmul.mubr.f32.gmra.mrb[0].mxu0 %v346
  %v348 = vpop.f32.mrb[0].mxu0
  %v349 = vadd.f32 %v192, %v348
  %v350 = vpop.f32.mrb[0].mxu0
  %351 = vdwg.mxu0
  %352 = vmatprep.subr.mxu0 0.0
  %v353 = vand.u32 %v47, 4294901760
  %v354 = vsub.f32 %v47, %v353
  %355 = vmatpush1.xpose.msra.mxu0 %v354
  %356 = vmatprep.subr.mxu0 0.0
  %v357 = vand.u32 %v50, 4294901760
  %v358 = vsub.f32 %v50, %v357
  %359 = vmatpush1.xpose.msra.mxu0 %v358
  %360 = vmatprep.subr.mxu0 0.0
  %v361 = vand.u32 %v53, 4294901760
  %v362 = vsub.f32 %v53, %v361
  %363 = vmatpush1.xpose.msra.mxu0 %v362
  %364 = vmatprep.subr.mxu0 0.0
  %v365 = vand.u32 %v56, 4294901760
  %v366 = vsub.f32 %v56, %v365
  %367 = vmatpush1.xpose.msra.mxu0 %v366
  %368 = vmatprep.subr.mxu0 0.0
  %v369 = vand.u32 %v59, 4294901760
  %v370 = vsub.f32 %v59, %v369
  %371 = vmatpush1.xpose.msra.mxu0 %v370
  %372 = vmatprep.subr.mxu0 0.0
  %v373 = vand.u32 %v62, 4294901760
  %v374 = vsub.f32 %v62, %v373
  %375 = vmatpush1.xpose.msra.mxu0 %v374
  %376 = vmatprep.subr.mxu0 0.0
  %v377 = vand.u32 %v65, 4294901760
  %v378 = vsub.f32 %v65, %v377
  %379 = vmatpush1.xpose.msra.mxu0 %v378
  %380 = vmatprep.subr.mxu0 0.0
  %v381 = vand.u32 %v68, 4294901760
  %v382 = vsub.f32 %v68, %v381
  %383 = vmatpush1.xpose.msra.mxu0 %v382
  %384 = vmatprep.subr.mxu0 0.0
  %v385 = vand.u32 %v71, 4294901760
  %v386 = vsub.f32 %v71, %v385
  %387 = vmatpush1.xpose.msra.mxu0 %v386
  %388 = vmatprep.subr.mxu0 0.0
  %v389 = vand.u32 %v74, 4294901760
  %v390 = vsub.f32 %v74, %v389
  %391 = vmatpush1.xpose.msra.mxu0 %v390
  %392 = vmatprep.subr.mxu0 0.0
  %v393 = vand.u32 %v77, 4294901760
  %v394 = vsub.f32 %v77, %v393
  %395 = vmatpush1.xpose.msra.mxu0 %v394
  %396 = vmatprep.subr.mxu0 0.0
  %v397 = vand.u32 %v80, 4294901760
  %v398 = vsub.f32 %v80, %v397
  %399 = vmatpush1.xpose.msra.mxu0 %v398
  %400 = vmatprep.subr.mxu0 0.0
  %v401 = vand.u32 %v83, 4294901760
  %v402 = vsub.f32 %v83, %v401
  %403 = vmatpush1.xpose.msra.mxu0 %v402
  %404 = vmatprep.subr.mxu0 0.0
  %v405 = vand.u32 %v86, 4294901760
  %v406 = vsub.f32 %v86, %v405
  %407 = vmatpush1.xpose.msra.mxu0 %v406
  %408 = vmatprep.subr.mxu0 0.0
  %v409 = vand.u32 %v89, 4294901760
  %v410 = vsub.f32 %v89, %v409
  %411 = vmatpush1.xpose.msra.mxu0 %v410
  %412 = vmatprep.subr.mxu0 0.0
  %v413 = vand.u32 %v92, 4294901760
  %v414 = vsub.f32 %v92, %v413
  %415 = vmatpush1.xpose.msra.mxu0 %v414
  %416 = vmatprep.subr.mxu0 0.0
  %417 = vmatpush1.xpose.msra.mxu0 0.0
  %418 = vmatprep.subr.mxu0 0.0
  %419 = vmatpush1.xpose.msra.mxu0 0.0
  %420 = vmatprep.subr.mxu0 0.0
  %421 = vmatpush1.xpose.msra.mxu0 0.0
  %422 = vmatprep.subr.mxu0 0.0
  %423 = vmatpush1.xpose.msra.mxu0 0.0
  %424 = vmatprep.subr.mxu0 0.0
  %425 = vmatpush1.xpose.msra.mxu0 0.0
  %426 = vmatprep.subr.mxu0 0.0
  %427 = vmatpush1.xpose.msra.mxu0 0.0
  %428 = vmatprep.subr.mxu0 0.0
  %429 = vmatpush1.xpose.msra.mxu0 0.0
  %430 = vmatprep.subr.mxu0 0.0
  %431 = vmatpush1.xpose.msra.mxu0 0.0
  %432 = vmatprep.subr.mxu0 0.0
  %433 = vmatpush1.xpose.msra.mxu0 0.0
  %434 = vmatprep.subr.mxu0 0.0
  %435 = vmatpush1.xpose.msra.mxu0 0.0
  %436 = vmatprep.subr.mxu0 0.0
  %437 = vmatpush1.xpose.msra.mxu0 0.0
  %438 = vmatprep.subr.mxu0 0.0
  %439 = vmatpush1.xpose.msra.mxu0 0.0
  %440 = vmatprep.subr.mxu0 0.0
  %441 = vmatpush1.xpose.msra.mxu0 0.0
  %442 = vmatprep.subr.mxu0 0.0
  %443 = vmatpush1.xpose.msra.mxu0 0.0
  %444 = vmatprep.subr.mxu0 0.0
  %445 = vmatpush1.xpose.msra.mxu0 0.0
  %446 = vmatprep.subr.mxu0 0.0
  %447 = vmatpush1.xpose.msra.mxu0 0.0
  %448 = vmatprep.mubr.f32.mxu0 0.0
  %v449 = vand.u32 %v42, 4294901760
  %v450 = vsub.f32 %v42, %v449
  %451 = vmatmul.mubr.f32.gmra.mrb[0].mxu0 %v450
  %v452 = vpop.f32.mrb[0].mxu0
  %v453 = vadd.f32 %v343, %v452
  %v454 = vpop.f32.mrb[0].mxu0
  %455 = vmatprep.mubr.f32.mxu0 0.0
  %v456 = vand.u32 %v44, 4294901760
  %v457 = vsub.f32 %v44, %v456
  %458 = vmatmul.mubr.f32.gmra.mrb[0].mxu0 %v457
  %v459 = vpop.f32.mrb[0].mxu0
  %v460 = vadd.f32 %v349, %v459
  %v461 = vpop.f32.mrb[0].mxu0
  %462 = vdwg.mxu0
  %463 = vmatprep.subr.mxu0 0.0
  %v464 = vand.u32 %v47, 4294901760
  %465 = vmatpush1.xpose.msra.mxu0 %v464
  %466 = vmatprep.subr.mxu0 0.0
  %v467 = vand.u32 %v50, 4294901760
  %468 = vmatpush1.xpose.msra.mxu0 %v467
  %469 = vmatprep.subr.mxu0 0.0
  %v470 = vand.u32 %v53, 4294901760
  %471 = vmatpush1.xpose.msra.mxu0 %v470
  %472 = vmatprep.subr.mxu0 0.0
  %v473 = vand.u32 %v56, 4294901760
  %474 = vmatpush1.xpose.msra.mxu0 %v473
  %475 = vmatprep.subr.mxu0 0.0
  %v476 = vand.u32 %v59, 4294901760
  %477 = vmatpush1.xpose.msra.mxu0 %v476
  %478 = vmatprep.subr.mxu0 0.0
  %v479 = vand.u32 %v62, 4294901760
  %480 = vmatpush1.xpose.msra.mxu0 %v479
  %481 = vmatprep.subr.mxu0 0.0
  %v482 = vand.u32 %v65, 4294901760
  %483 = vmatpush1.xpose.msra.mxu0 %v482
  %484 = vmatprep.subr.mxu0 0.0
  %v485 = vand.u32 %v68, 4294901760
  %486 = vmatpush1.xpose.msra.mxu0 %v485
  %487 = vmatprep.subr.mxu0 0.0
  %v488 = vand.u32 %v71, 4294901760
  %489 = vmatpush1.xpose.msra.mxu0 %v488
  %490 = vmatprep.subr.mxu0 0.0
  %v491 = vand.u32 %v74, 4294901760
  %492 = vmatpush1.xpose.msra.mxu0 %v491
  %493 = vmatprep.subr.mxu0 0.0
  %v494 = vand.u32 %v77, 4294901760
  %495 = vmatpush1.xpose.msra.mxu0 %v494
  %496 = vmatprep.subr.mxu0 0.0
  %v497 = vand.u32 %v80, 4294901760
  %498 = vmatpush1.xpose.msra.mxu0 %v497
  %499 = vmatprep.subr.mxu0 0.0
  %v500 = vand.u32 %v83, 4294901760
  %501 = vmatpush1.xpose.msra.mxu0 %v500
  %502 = vmatprep.subr.mxu0 0.0
  %v503 = vand.u32 %v86, 4294901760
  %504 = vmatpush1.xpose.msra.mxu0 %v503
  %505 = vmatprep.subr.mxu0 0.0
  %v506 = vand.u32 %v89, 4294901760
  %507 = vmatpush1.xpose.msra.mxu0 %v506
  %508 = vmatprep.subr.mxu0 0.0
  %v509 = vand.u32 %v92, 4294901760
  %510 = vmatpush1.xpose.msra.mxu0 %v509
  %511 = vmatprep.subr.mxu0 0.0
  %512 = vmatpush1.xpose.msra.mxu0 0.0
  %513 = vmatprep.subr.mxu0 0.0
  %514 = vmatpush1.xpose.msra.mxu0 0.0
  %515 = vmatprep.subr.mxu0 0.0
  %516 = vmatpush1.xpose.msra.mxu0 0.0
  %517 = vmatprep.subr.mxu0 0.0
  %518 = vmatpush1.xpose.msra.mxu0 0.0
  %519 = vmatprep.subr.mxu0 0.0
  %520 = vmatpush1.xpose.msra.mxu0 0.0
  %521 = vmatprep.subr.mxu0 0.0
  %522 = vmatpush1.xpose.msra.mxu0 0.0
  %523 = vmatprep.subr.mxu0 0.0
  %524 = vmatpush1.xpose.msra.mxu0 0.0
  %525 = vmatprep.subr.mxu0 0.0
  %526 = vmatpush1.xpose.msra.mxu0 0.0
  %527 = vmatprep.subr.mxu0 0.0
  %528 = vmatpush1.xpose.msra.mxu0 0.0
  %529 = vmatprep.subr.mxu0 0.0
  %530 = vmatpush1.xpose.msra.mxu0 0.0
  %531 = vmatprep.subr.mxu0 0.0
  %532 = vmatpush1.xpose.msra.mxu0 0.0
  %533 = vmatprep.subr.mxu0 0.0
  %534 = vmatpush1.xpose.msra.mxu0 0.0
  %535 = vmatprep.subr.mxu0 0.0
  %536 = vmatpush1.xpose.msra.mxu0 0.0
  %537 = vmatprep.subr.mxu0 0.0
  %538 = vmatpush1.xpose.msra.mxu0 0.0
  %539 = vmatprep.subr.mxu0 0.0
  %540 = vmatpush1.xpose.msra.mxu0 0.0
  %541 = vmatprep.subr.mxu0 0.0
  %542 = vmatpush1.xpose.msra.mxu0 0.0
  %543 = vmatprep.mubr.f32.mxu0 0.0
  %v544 = vand.u32 %v42, 4294901760
  %v545 = vsub.f32 %v42, %v544
  %v546 = vand.u32 %v545, 4294901760
  %547 = vmatmul.mubr.f32.gmra.mrb[0].mxu0 %v546
  %v548 = vpop.f32.mrb[0].mxu0
  %v549 = vadd.f32 %v453, %v548
  %v550 = vpop.f32.mrb[0].mxu0
  %551 = vmatprep.mubr.f32.mxu0 0.0
  %v552 = vand.u32 %v44, 4294901760
  %v553 = vsub.f32 %v44, %v552
  %v554 = vand.u32 %v553, 4294901760
  %555 = vmatmul.mubr.f32.gmra.mrb[0].mxu0 %v554
  %v556 = vpop.f32.mrb[0].mxu0
  %v557 = vadd.f32 %v460, %v556
  %v558 = vpop.f32.mrb[0].mxu0
  %559 = vdwg.mxu0
  %560 = vmatprep.subr.mxu0 0.0
  %v561 = vand.u32 %v47, 4294901760
  %v562 = vsub.f32 %v47, %v561
  %v563 = vand.u32 %v562, 4294901760
  %564 = vmatpush1.xpose.msra.mxu0 %v563
  %565 = vmatprep.subr.mxu0 0.0
  %v566 = vand.u32 %v50, 4294901760
  %v567 = vsub.f32 %v50, %v566
  %v568 = vand.u32 %v567, 4294901760
  %569 = vmatpush1.xpose.msra.mxu0 %v568
  %570 = vmatprep.subr.mxu0 0.0
  %v571 = vand.u32 %v53, 4294901760
  %v572 = vsub.f32 %v53, %v571
  %v573 = vand.u32 %v572, 4294901760
  %574 = vmatpush1.xpose.msra.mxu0 %v573
  %575 = vmatprep.subr.mxu0 0.0
  %v576 = vand.u32 %v56, 4294901760
  %v577 = vsub.f32 %v56, %v576
  %v578 = vand.u32 %v577, 4294901760
  %579 = vmatpush1.xpose.msra.mxu0 %v578
  %580 = vmatprep.subr.mxu0 0.0
  %v581 = vand.u32 %v59, 4294901760
  %v582 = vsub.f32 %v59, %v581
  %v583 = vand.u32 %v582, 4294901760
  %584 = vmatpush1.xpose.msra.mxu0 %v583
  %585 = vmatprep.subr.mxu0 0.0
  %v586 = vand.u32 %v62, 4294901760
  %v587 = vsub.f32 %v62, %v586
  %v588 = vand.u32 %v587, 4294901760
  %589 = vmatpush1.xpose.msra.mxu0 %v588
  %590 = vmatprep.subr.mxu0 0.0
  %v591 = vand.u32 %v65, 4294901760
  %v592 = vsub.f32 %v65, %v591
  %v593 = vand.u32 %v592, 4294901760
  %594 = vmatpush1.xpose.msra.mxu0 %v593
  %595 = vmatprep.subr.mxu0 0.0
  %v596 = vand.u32 %v68, 4294901760
  %v597 = vsub.f32 %v68, %v596
  %v598 = vand.u32 %v597, 4294901760
  %599 = vmatpush1.xpose.msra.mxu0 %v598
  %600 = vmatprep.subr.mxu0 0.0
  %v601 = vand.u32 %v71, 4294901760
  %v602 = vsub.f32 %v71, %v601
  %v603 = vand.u32 %v602, 4294901760
  %604 = vmatpush1.xpose.msra.mxu0 %v603
  %605 = vmatprep.subr.mxu0 0.0
  %v606 = vand.u32 %v74, 4294901760
  %v607 = vsub.f32 %v74, %v606
  %v608 = vand.u32 %v607, 4294901760
  %609 = vmatpush1.xpose.msra.mxu0 %v608
  %610 = vmatprep.subr.mxu0 0.0
  %v611 = vand.u32 %v77, 4294901760
  %v612 = vsub.f32 %v77, %v611
  %v613 = vand.u32 %v612, 4294901760
  %614 = vmatpush1.xpose.msra.mxu0 %v613
  %615 = vmatprep.subr.mxu0 0.0
  %v616 = vand.u32 %v80, 4294901760
  %v617 = vsub.f32 %v80, %v616
  %v618 = vand.u32 %v617, 4294901760
  %619 = vmatpush1.xpose.msra.mxu0 %v618
  %620 = vmatprep.subr.mxu0 0.0
  %v621 = vand.u32 %v83, 4294901760
  %v622 = vsub.f32 %v83, %v621
  %v623 = vand.u32 %v622, 4294901760
  %624 = vmatpush1.xpose.msra.mxu0 %v623
  %625 = vmatprep.subr.mxu0 0.0
  %v626 = vand.u32 %v86, 4294901760
  %v627 = vsub.f32 %v86, %v626
  %v628 = vand.u32 %v627, 4294901760
  %629 = vmatpush1.xpose.msra.mxu0 %v628
  %630 = vmatprep.subr.mxu0 0.0
  %v631 = vand.u32 %v89, 4294901760
  %v632 = vsub.f32 %v89, %v631
  %v633 = vand.u32 %v632, 4294901760
  %634 = vmatpush1.xpose.msra.mxu0 %v633
  %635 = vmatprep.subr.mxu0 0.0
  %v636 = vand.u32 %v92, 4294901760
  %v637 = vsub.f32 %v92, %v636
  %v638 = vand.u32 %v637, 4294901760
  %639 = vmatpush1.xpose.msra.mxu0 %v638
  %640 = vmatprep.subr.mxu0 0.0
  %641 = vmatpush1.xpose.msra.mxu0 0.0
  %642 = vmatprep.subr.mxu0 0.0
  %643 = vmatpush1.xpose.msra.mxu0 0.0
  %644 = vmatprep.subr.mxu0 0.0
  %645 = vmatpush1.xpose.msra.mxu0 0.0
  %646 = vmatprep.subr.mxu0 0.0
  %647 = vmatpush1.xpose.msra.mxu0 0.0
  %648 = vmatprep.subr.mxu0 0.0
  %649 = vmatpush1.xpose.msra.mxu0 0.0
  %650 = vmatprep.subr.mxu0 0.0
  %651 = vmatpush1.xpose.msra.mxu0 0.0
  %652 = vmatprep.subr.mxu0 0.0
  %653 = vmatpush1.xpose.msra.mxu0 0.0
  %654 = vmatprep.subr.mxu0 0.0
  %655 = vmatpush1.xpose.msra.mxu0 0.0
  %656 = vmatprep.subr.mxu0 0.0
  %657 = vmatpush1.xpose.msra.mxu0 0.0
  %658 = vmatprep.subr.mxu0 0.0
  %659 = vmatpush1.xpose.msra.mxu0 0.0
  %660 = vmatprep.subr.mxu0 0.0
  %661 = vmatpush1.xpose.msra.mxu0 0.0
  %662 = vmatprep.subr.mxu0 0.0
  %663 = vmatpush1.xpose.msra.mxu0 0.0
  %664 = vmatprep.subr.mxu0 0.0
  %665 = vmatpush1.xpose.msra.mxu0 0.0
  %666 = vmatprep.subr.mxu0 0.0
  %667 = vmatpush1.xpose.msra.mxu0 0.0
  %668 = vmatprep.subr.mxu0 0.0
  %669 = vmatpush1.xpose.msra.mxu0 0.0
  %670 = vmatprep.subr.mxu0 0.0
  %671 = vmatpush1.xpose.msra.mxu0 0.0
  %672 = vmatprep.mubr.f32.mxu0 0.0
  %v673 = vand.u32 %v42, 4294901760
  %674 = vmatmul.mubr.f32.gmra.mrb[0].mxu0 %v673
  %v675 = vpop.f32.mrb[0].mxu0
  %v676 = vadd.f32 %v549, %v675
  %v677 = vpop.f32.mrb[0].mxu0
  %678 = vmatprep.mubr.f32.mxu0 0.0
  %v679 = vand.u32 %v44, 4294901760
  %680 = vmatmul.mubr.f32.gmra.mrb[0].mxu0 %v679
  %v681 = vpop.f32.mrb[0].mxu0
  %v682 = vadd.f32 %v557, %v681
  %v683 = vpop.f32.mrb[0].mxu0
  %684 = vdwg.mxu0
  %685 = vmatprep.subr.mxu0 0.0
  %v686 = vand.u32 %v47, 4294901760
  %687 = vmatpush1.xpose.msra.mxu0 %v686
  %688 = vmatprep.subr.mxu0 0.0
  %v689 = vand.u32 %v50, 4294901760
  %690 = vmatpush1.xpose.msra.mxu0 %v689
  %691 = vmatprep.subr.mxu0 0.0
  %v692 = vand.u32 %v53, 4294901760
  %693 = vmatpush1.xpose.msra.mxu0 %v692
  %694 = vmatprep.subr.mxu0 0.0
  %v695 = vand.u32 %v56, 4294901760
  %696 = vmatpush1.xpose.msra.mxu0 %v695
  %697 = vmatprep.subr.mxu0 0.0
  %v698 = vand.u32 %v59, 4294901760
  %699 = vmatpush1.xpose.msra.mxu0 %v698
  %700 = vmatprep.subr.mxu0 0.0
  %v701 = vand.u32 %v62, 4294901760
  %702 = vmatpush1.xpose.msra.mxu0 %v701
  %703 = vmatprep.subr.mxu0 0.0
  %v704 = vand.u32 %v65, 4294901760
  %705 = vmatpush1.xpose.msra.mxu0 %v704
  %706 = vmatprep.subr.mxu0 0.0
  %v707 = vand.u32 %v68, 4294901760
  %708 = vmatpush1.xpose.msra.mxu0 %v707
  %709 = vmatprep.subr.mxu0 0.0
  %v710 = vand.u32 %v71, 4294901760
  %711 = vmatpush1.xpose.msra.mxu0 %v710
  %712 = vmatprep.subr.mxu0 0.0
  %v713 = vand.u32 %v74, 4294901760
  %714 = vmatpush1.xpose.msra.mxu0 %v713
  %715 = vmatprep.subr.mxu0 0.0
  %v716 = vand.u32 %v77, 4294901760
  %717 = vmatpush1.xpose.msra.mxu0 %v716
  %718 = vmatprep.subr.mxu0 0.0
  %v719 = vand.u32 %v80, 4294901760
  %720 = vmatpush1.xpose.msra.mxu0 %v719
  %721 = vmatprep.subr.mxu0 0.0
  %v722 = vand.u32 %v83, 4294901760
  %723 = vmatpush1.xpose.msra.mxu0 %v722
  %724 = vmatprep.subr.mxu0 0.0
  %v725 = vand.u32 %v86, 4294901760
  %726 = vmatpush1.xpose.msra.mxu0 %v725
  %727 = vmatprep.subr.mxu0 0.0
  %v728 = vand.u32 %v89, 4294901760
  %729 = vmatpush1.xpose.msra.mxu0 %v728
  %730 = vmatprep.subr.mxu0 0.0
  %v731 = vand.u32 %v92, 4294901760
  %732 = vmatpush1.xpose.msra.mxu0 %v731
  %733 = vmatprep.subr.mxu0 0.0
  %734 = vmatpush1.xpose.msra.mxu0 0.0
  %735 = vmatprep.subr.mxu0 0.0
  %736 = vmatpush1.xpose.msra.mxu0 0.0
  %737 = vmatprep.subr.mxu0 0.0
  %738 = vmatpush1.xpose.msra.mxu0 0.0
  %739 = vmatprep.subr.mxu0 0.0
  %740 = vmatpush1.xpose.msra.mxu0 0.0
  %741 = vmatprep.subr.mxu0 0.0
  %742 = vmatpush1.xpose.msra.mxu0 0.0
  %743 = vmatprep.subr.mxu0 0.0
  %744 = vmatpush1.xpose.msra.mxu0 0.0
  %745 = vmatprep.subr.mxu0 0.0
  %746 = vmatpush1.xpose.msra.mxu0 0.0
  %747 = vmatprep.subr.mxu0 0.0
  %748 = vmatpush1.xpose.msra.mxu0 0.0
  %749 = vmatprep.subr.mxu0 0.0
  %750 = vmatpush1.xpose.msra.mxu0 0.0
  %751 = vmatprep.subr.mxu0 0.0
  %752 = vmatpush1.xpose.msra.mxu0 0.0
  %753 = vmatprep.subr.mxu0 0.0
  %754 = vmatpush1.xpose.msra.mxu0 0.0
  %755 = vmatprep.subr.mxu0 0.0
  %756 = vmatpush1.xpose.msra.mxu0 0.0
  %757 = vmatprep.subr.mxu0 0.0
  %758 = vmatpush1.xpose.msra.mxu0 0.0
  %759 = vmatprep.subr.mxu0 0.0
  %760 = vmatpush1.xpose.msra.mxu0 0.0
  %761 = vmatprep.subr.mxu0 0.0
  %762 = vmatpush1.xpose.msra.mxu0 0.0
  %763 = vmatprep.subr.mxu0 0.0
  %764 = vmatpush1.xpose.msra.mxu0 0.0
  %765 = vmatprep.mubr.f32.mxu0 0.0
  %v766 = vand.u32 %v42, 4294901760
  %767 = vmatmul.mubr.f32.gmra.mrb[0].mxu0 %v766
  %v768 = vpop.f32.mrb[0].mxu0
  %v769 = vadd.f32 %v676, %v768
  %v770 = vpop.f32.mrb[0].mxu0
  %771 = vmatprep.mubr.f32.mxu0 0.0
  %v772 = vand.u32 %v44, 4294901760
  %773 = vmatmul.mubr.f32.gmra.mrb[0].mxu0 %v772
  %v774 = vpop.f32.mrb[0].mxu0
  %v775 = vadd.f32 %v682, %v774
  %v776 = vpop.f32.mrb[0].mxu0
  %777 = vdwg.mxu0
  %v778 = vmax.f32 %v769, 0.0
  %v779 = vmax.f32 %v775, 0.0
  %781 = vset.pattern.permute.xlu0 32
  %782 = vperm.xlu0 %781, %v13
  %v783 = vpop.permute.xlu0 %782
  %vm785 = vcmask 130048
  %v786 = vsel %vm785, %v13, 0
  %788 = vmatprep.subr.mxu0 0.0
  %v789 = vand.u32 %v778, 4294901760
  %790 = vmatpush1.msra.mxu0 %v789
  %791 = vmatprep.subr.mxu0 0.0
  %v792 = vand.u32 %v779, 4294901760
  %793 = vmatpush1.msra.mxu0 %v792
  %794 = vmatprep.subr.mxu0 0.0
  %795 = vmatpush1.msra.mxu0 0.0
  %796 = vmatprep.subr.mxu0 0.0
  %797 = vmatpush1.msra.mxu0 0.0
  %798 = vmatprep.subr.mxu0 0.0
  %799 = vmatpush1.msra.mxu0 0.0
  %800 = vmatprep.subr.mxu0 0.0
  %801 = vmatpush1.msra.mxu0 0.0
  %802 = vmatprep.subr.mxu0 0.0
  %803 = vmatpush1.msra.mxu0 0.0
  %804 = vmatprep.subr.mxu0 0.0
  %805 = vmatpush1.msra.mxu0 0.0
  %806 = vmatprep.subr.mxu0 0.0
  %807 = vmatpush1.msra.mxu0 0.0
  %808 = vmatprep.subr.mxu0 0.0
  %809 = vmatpush1.msra.mxu0 0.0
  %810 = vmatprep.subr.mxu0 0.0
  %811 = vmatpush1.msra.mxu0 0.0
  %812 = vmatprep.subr.mxu0 0.0
  %813 = vmatpush1.msra.mxu0 0.0
  %814 = vmatprep.subr.mxu0 0.0
  %815 = vmatpush1.msra.mxu0 0.0
  %816 = vmatprep.subr.mxu0 0.0
  %817 = vmatpush1.msra.mxu0 0.0
  %818 = vmatprep.subr.mxu0 0.0
  %819 = vmatpush1.msra.mxu0 0.0
  %820 = vmatprep.subr.mxu0 0.0
  %821 = vmatpush1.msra.mxu0 0.0
  %822 = vmatprep.subr.mxu0 0.0
  %823 = vmatpush1.msra.mxu0 0.0
  %824 = vmatprep.subr.mxu0 0.0
  %825 = vmatpush1.msra.mxu0 0.0
  %826 = vmatprep.subr.mxu0 0.0
  %827 = vmatpush1.msra.mxu0 0.0
  %828 = vmatprep.subr.mxu0 0.0
  %829 = vmatpush1.msra.mxu0 0.0
  %830 = vmatprep.subr.mxu0 0.0
  %831 = vmatpush1.msra.mxu0 0.0
  %832 = vmatprep.subr.mxu0 0.0
  %833 = vmatpush1.msra.mxu0 0.0
  %834 = vmatprep.subr.mxu0 0.0
  %835 = vmatpush1.msra.mxu0 0.0
  %836 = vmatprep.subr.mxu0 0.0
  %837 = vmatpush1.msra.mxu0 0.0
  %838 = vmatprep.subr.mxu0 0.0
  %839 = vmatpush1.msra.mxu0 0.0
  %840 = vmatprep.subr.mxu0 0.0
  %841 = vmatpush1.msra.mxu0 0.0
  %842 = vmatprep.subr.mxu0 0.0
  %843 = vmatpush1.msra.mxu0 0.0
  %844 = vmatprep.subr.mxu0 0.0
  %845 = vmatpush1.msra.mxu0 0.0
  %846 = vmatprep.subr.mxu0 0.0
  %847 = vmatpush1.msra.mxu0 0.0
  %848 = vmatprep.subr.mxu0 0.0
  %849 = vmatpush1.msra.mxu0 0.0
  %850 = vmatprep.subr.mxu0 0.0
  %851 = vmatpush1.msra.mxu0 0.0
  %852 = vmatprep.subr.mxu0 0.0
  %853 = vmatpush1.msra.mxu0 0.0
  %854 = vmatprep.mubr.f32.mxu0 0.0
  %v855 = vand.u32 %v786, 4294901760
  %v856 = vsub.f32 %v786, %v855
  %v857 = vand.u32 %v856, 4294901760
  %v858 = vsub.f32 %v856, %v857
  %v859 = vand.u32 %v858, 4294901760
  %860 = vmatmul.mubr.f32.gmra.mrb[0].mxu0 %v859
  %v861 = vpop.f32.mrb[0].mxu0
  %v862 = vadd.f32 %v783, %v861
  %v863 = vpop.f32.mrb[0].mxu0
  %864 = vdwg.mxu0
  %865 = vmatprep.subr.mxu0 0.0
  %v866 = vand.u32 %v778, 4294901760
  %v867 = vsub.f32 %v778, %v866
  %v868 = vand.u32 %v867, 4294901760
  %v869 = vsub.f32 %v867, %v868
  %v870 = vand.u32 %v869, 4294901760
  %871 = vmatpush1.msra.mxu0 %v870
  %872 = vmatprep.subr.mxu0 0.0
  %v873 = vand.u32 %v779, 4294901760
  %v874 = vsub.f32 %v779, %v873
  %v875 = vand.u32 %v874, 4294901760
  %v876 = vsub.f32 %v874, %v875
  %v877 = vand.u32 %v876, 4294901760
  %878 = vmatpush1.msra.mxu0 %v877
  %879 = vmatprep.subr.mxu0 0.0
  %880 = vmatpush1.msra.mxu0 0.0
  %881 = vmatprep.subr.mxu0 0.0
  %882 = vmatpush1.msra.mxu0 0.0
  %883 = vmatprep.subr.mxu0 0.0
  %884 = vmatpush1.msra.mxu0 0.0
  %885 = vmatprep.subr.mxu0 0.0
  %886 = vmatpush1.msra.mxu0 0.0
  %887 = vmatprep.subr.mxu0 0.0
  %888 = vmatpush1.msra.mxu0 0.0
  %889 = vmatprep.subr.mxu0 0.0
  %890 = vmatpush1.msra.mxu0 0.0
  %891 = vmatprep.subr.mxu0 0.0
  %892 = vmatpush1.msra.mxu0 0.0
  %893 = vmatprep.subr.mxu0 0.0
  %894 = vmatpush1.msra.mxu0 0.0
  %895 = vmatprep.subr.mxu0 0.0
  %896 = vmatpush1.msra.mxu0 0.0
  %897 = vmatprep.subr.mxu0 0.0
  %898 = vmatpush1.msra.mxu0 0.0
  %899 = vmatprep.subr.mxu0 0.0
  %900 = vmatpush1.msra.mxu0 0.0
  %901 = vmatprep.subr.mxu0 0.0
  %902 = vmatpush1.msra.mxu0 0.0
  %903 = vmatprep.subr.mxu0 0.0
  %904 = vmatpush1.msra.mxu0 0.0
  %905 = vmatprep.subr.mxu0 0.0
  %906 = vmatpush1.msra.mxu0 0.0
  %907 = vmatprep.subr.mxu0 0.0
  %908 = vmatpush1.msra.mxu0 0.0
  %909 = vmatprep.subr.mxu0 0.0
  %910 = vmatpush1.msra.mxu0 0.0
  %911 = vmatprep.subr.mxu0 0.0
  %912 = vmatpush1.msra.mxu0 0.0
  %913 = vmatprep.subr.mxu0 0.0
  %914 = vmatpush1.msra.mxu0 0.0
  %915 = vmatprep.subr.mxu0 0.0
  %916 = vmatpush1.msra.mxu0 0.0
  %917 = vmatprep.subr.mxu0 0.0
  %918 = vmatpush1.msra.mxu0 0.0
  %919 = vmatprep.subr.mxu0 0.0
  %920 = vmatpush1.msra.mxu0 0.0
  %921 = vmatprep.subr.mxu0 0.0
  %922 = vmatpush1.msra.mxu0 0.0
  %923 = vmatprep.subr.mxu0 0.0
  %924 = vmatpush1.msra.mxu0 0.0
  %925 = vmatprep.subr.mxu0 0.0
  %926 = vmatpush1.msra.mxu0 0.0
  %927 = vmatprep.subr.mxu0 0.0
  %928 = vmatpush1.msra.mxu0 0.0
  %929 = vmatprep.subr.mxu0 0.0
  %930 = vmatpush1.msra.mxu0 0.0
  %931 = vmatprep.subr.mxu0 0.0
  %932 = vmatpush1.msra.mxu0 0.0
  %933 = vmatprep.subr.mxu0 0.0
  %934 = vmatpush1.msra.mxu0 0.0
  %935 = vmatprep.subr.mxu0 0.0
  %936 = vmatpush1.msra.mxu0 0.0
  %937 = vmatprep.subr.mxu0 0.0
  %938 = vmatpush1.msra.mxu0 0.0
  %939 = vmatprep.mubr.f32.mxu0 0.0
  %v940 = vand.u32 %v786, 4294901760
  %941 = vmatmul.mubr.f32.gmra.mrb[0].mxu0 %v940
  %v942 = vpop.f32.mrb[0].mxu0
  %v943 = vadd.f32 %v862, %v942
  %v944 = vpop.f32.mrb[0].mxu0
  %945 = vdwg.mxu0
  %946 = vmatprep.subr.mxu0 0.0
  %v947 = vand.u32 %v778, 4294901760
  %v948 = vsub.f32 %v778, %v947
  %949 = vmatpush1.msra.mxu0 %v948
  %950 = vmatprep.subr.mxu0 0.0
  %v951 = vand.u32 %v779, 4294901760
  %v952 = vsub.f32 %v779, %v951
  %953 = vmatpush1.msra.mxu0 %v952
  %954 = vmatprep.subr.mxu0 0.0
  %955 = vmatpush1.msra.mxu0 0.0
  %956 = vmatprep.subr.mxu0 0.0
  %957 = vmatpush1.msra.mxu0 0.0
  %958 = vmatprep.subr.mxu0 0.0
  %959 = vmatpush1.msra.mxu0 0.0
  %960 = vmatprep.subr.mxu0 0.0
  %961 = vmatpush1.msra.mxu0 0.0
  %962 = vmatprep.subr.mxu0 0.0
  %963 = vmatpush1.msra.mxu0 0.0
  %964 = vmatprep.subr.mxu0 0.0
  %965 = vmatpush1.msra.mxu0 0.0
  %966 = vmatprep.subr.mxu0 0.0
  %967 = vmatpush1.msra.mxu0 0.0
  %968 = vmatprep.subr.mxu0 0.0
  %969 = vmatpush1.msra.mxu0 0.0
  %970 = vmatprep.subr.mxu0 0.0
  %971 = vmatpush1.msra.mxu0 0.0
  %972 = vmatprep.subr.mxu0 0.0
  %973 = vmatpush1.msra.mxu0 0.0
  %974 = vmatprep.subr.mxu0 0.0
  %975 = vmatpush1.msra.mxu0 0.0
  %976 = vmatprep.subr.mxu0 0.0
  %977 = vmatpush1.msra.mxu0 0.0
  %978 = vmatprep.subr.mxu0 0.0
  %979 = vmatpush1.msra.mxu0 0.0
  %980 = vmatprep.subr.mxu0 0.0
  %981 = vmatpush1.msra.mxu0 0.0
  %982 = vmatprep.subr.mxu0 0.0
  %983 = vmatpush1.msra.mxu0 0.0
  %984 = vmatprep.subr.mxu0 0.0
  %985 = vmatpush1.msra.mxu0 0.0
  %986 = vmatprep.subr.mxu0 0.0
  %987 = vmatpush1.msra.mxu0 0.0
  %988 = vmatprep.subr.mxu0 0.0
  %989 = vmatpush1.msra.mxu0 0.0
  %990 = vmatprep.subr.mxu0 0.0
  %991 = vmatpush1.msra.mxu0 0.0
  %992 = vmatprep.subr.mxu0 0.0
  %993 = vmatpush1.msra.mxu0 0.0
  %994 = vmatprep.subr.mxu0 0.0
  %995 = vmatpush1.msra.mxu0 0.0
  %996 = vmatprep.subr.mxu0 0.0
  %997 = vmatpush1.msra.mxu0 0.0
  %998 = vmatprep.subr.mxu0 0.0
  %999 = vmatpush1.msra.mxu0 0.0
  %1000 = vmatprep.subr.mxu0 0.0
  %1001 = vmatpush1.msra.mxu0 0.0
  %1002 = vmatprep.subr.mxu0 0.0
  %1003 = vmatpush1.msra.mxu0 0.0
  %1004 = vmatprep.subr.mxu0 0.0
  %1005 = vmatpush1.msra.mxu0 0.0
  %1006 = vmatprep.subr.mxu0 0.0
  %1007 = vmatpush1.msra.mxu0 0.0
  %1008 = vmatprep.subr.mxu0 0.0
  %1009 = vmatpush1.msra.mxu0 0.0
  %1010 = vmatprep.subr.mxu0 0.0
  %1011 = vmatpush1.msra.mxu0 0.0
  %1012 = vmatprep.subr.mxu0 0.0
  %1013 = vmatpush1.msra.mxu0 0.0
  %1014 = vmatprep.mubr.f32.mxu0 0.0
  %v1015 = vand.u32 %v786, 4294901760
  %v1016 = vsub.f32 %v786, %v1015
  %1017 = vmatmul.mubr.f32.gmra.mrb[0].mxu0 %v1016
  %v1018 = vpop.f32.mrb[0].mxu0
  %v1019 = vadd.f32 %v943, %v1018
  %v1020 = vpop.f32.mrb[0].mxu0
  %1021 = vdwg.mxu0
  %1022 = vmatprep.subr.mxu0 0.0
  %v1023 = vand.u32 %v778, 4294901760
  %1024 = vmatpush1.msra.mxu0 %v1023
  %1025 = vmatprep.subr.mxu0 0.0
  %v1026 = vand.u32 %v779, 4294901760
  %1027 = vmatpush1.msra.mxu0 %v1026
  %1028 = vmatprep.subr.mxu0 0.0
  %1029 = vmatpush1.msra.mxu0 0.0
  %1030 = vmatprep.subr.mxu0 0.0
  %1031 = vmatpush1.msra.mxu0 0.0
  %1032 = vmatprep.subr.mxu0 0.0
  %1033 = vmatpush1.msra.mxu0 0.0
  %1034 = vmatprep.subr.mxu0 0.0
  %1035 = vmatpush1.msra.mxu0 0.0
  %1036 = vmatprep.subr.mxu0 0.0
  %1037 = vmatpush1.msra.mxu0 0.0
  %1038 = vmatprep.subr.mxu0 0.0
  %1039 = vmatpush1.msra.mxu0 0.0
  %1040 = vmatprep.subr.mxu0 0.0
  %1041 = vmatpush1.msra.mxu0 0.0
  %1042 = vmatprep.subr.mxu0 0.0
  %1043 = vmatpush1.msra.mxu0 0.0
  %1044 = vmatprep.subr.mxu0 0.0
  %1045 = vmatpush1.msra.mxu0 0.0
  %1046 = vmatprep.subr.mxu0 0.0
  %1047 = vmatpush1.msra.mxu0 0.0
  %1048 = vmatprep.subr.mxu0 0.0
  %1049 = vmatpush1.msra.mxu0 0.0
  %1050 = vmatprep.subr.mxu0 0.0
  %1051 = vmatpush1.msra.mxu0 0.0
  %1052 = vmatprep.subr.mxu0 0.0
  %1053 = vmatpush1.msra.mxu0 0.0
  %1054 = vmatprep.subr.mxu0 0.0
  %1055 = vmatpush1.msra.mxu0 0.0
  %1056 = vmatprep.subr.mxu0 0.0
  %1057 = vmatpush1.msra.mxu0 0.0
  %1058 = vmatprep.subr.mxu0 0.0
  %1059 = vmatpush1.msra.mxu0 0.0
  %1060 = vmatprep.subr.mxu0 0.0
  %1061 = vmatpush1.msra.mxu0 0.0
  %1062 = vmatprep.subr.mxu0 0.0
  %1063 = vmatpush1.msra.mxu0 0.0
  %1064 = vmatprep.subr.mxu0 0.0
  %1065 = vmatpush1.msra.mxu0 0.0
  %1066 = vmatprep.subr.mxu0 0.0
  %1067 = vmatpush1.msra.mxu0 0.0
  %1068 = vmatprep.subr.mxu0 0.0
  %1069 = vmatpush1.msra.mxu0 0.0
  %1070 = vmatprep.subr.mxu0 0.0
  %1071 = vmatpush1.msra.mxu0 0.0
  %1072 = vmatprep.subr.mxu0 0.0
  %1073 = vmatpush1.msra.mxu0 0.0
  %1074 = vmatprep.subr.mxu0 0.0
  %1075 = vmatpush1.msra.mxu0 0.0
  %1076 = vmatprep.subr.mxu0 0.0
  %1077 = vmatpush1.msra.mxu0 0.0
  %1078 = vmatprep.subr.mxu0 0.0
  %1079 = vmatpush1.msra.mxu0 0.0
  %1080 = vmatprep.subr.mxu0 0.0
  %1081 = vmatpush1.msra.mxu0 0.0
  %1082 = vmatprep.subr.mxu0 0.0
  %1083 = vmatpush1.msra.mxu0 0.0
  %1084 = vmatprep.subr.mxu0 0.0
  %1085 = vmatpush1.msra.mxu0 0.0
  %1086 = vmatprep.subr.mxu0 0.0
  %1087 = vmatpush1.msra.mxu0 0.0
  %1088 = vmatprep.mubr.f32.mxu0 0.0
  %v1089 = vand.u32 %v786, 4294901760
  %v1090 = vsub.f32 %v786, %v1089
  %v1091 = vand.u32 %v1090, 4294901760
  %1092 = vmatmul.mubr.f32.gmra.mrb[0].mxu0 %v1091
  %v1093 = vpop.f32.mrb[0].mxu0
  %v1094 = vadd.f32 %v1019, %v1093
  %v1095 = vpop.f32.mrb[0].mxu0
  %1096 = vdwg.mxu0
  %1097 = vmatprep.subr.mxu0 0.0
  %v1098 = vand.u32 %v778, 4294901760
  %v1099 = vsub.f32 %v778, %v1098
  %v1100 = vand.u32 %v1099, 4294901760
  %1101 = vmatpush1.msra.mxu0 %v1100
  %1102 = vmatprep.subr.mxu0 0.0
  %v1103 = vand.u32 %v779, 4294901760
  %v1104 = vsub.f32 %v779, %v1103
  %v1105 = vand.u32 %v1104, 4294901760
  %1106 = vmatpush1.msra.mxu0 %v1105
  %1107 = vmatprep.subr.mxu0 0.0
  %1108 = vmatpush1.msra.mxu0 0.0
  %1109 = vmatprep.subr.mxu0 0.0
  %1110 = vmatpush1.msra.mxu0 0.0
  %1111 = vmatprep.subr.mxu0 0.0
  %1112 = vmatpush1.msra.mxu0 0.0
  %1113 = vmatprep.subr.mxu0 0.0
  %1114 = vmatpush1.msra.mxu0 0.0
  %1115 = vmatprep.subr.mxu0 0.0
  %1116 = vmatpush1.msra.mxu0 0.0
  %1117 = vmatprep.subr.mxu0 0.0
  %1118 = vmatpush1.msra.mxu0 0.0
  %1119 = vmatprep.subr.mxu0 0.0
  %1120 = vmatpush1.msra.mxu0 0.0
  %1121 = vmatprep.subr.mxu0 0.0
  %1122 = vmatpush1.msra.mxu0 0.0
  %1123 = vmatprep.subr.mxu0 0.0
  %1124 = vmatpush1.msra.mxu0 0.0
  %1125 = vmatprep.subr.mxu0 0.0
  %1126 = vmatpush1.msra.mxu0 0.0
  %1127 = vmatprep.subr.mxu0 0.0
  %1128 = vmatpush1.msra.mxu0 0.0
  %1129 = vmatprep.subr.mxu0 0.0
  %1130 = vmatpush1.msra.mxu0 0.0
  %1131 = vmatprep.subr.mxu0 0.0
  %1132 = vmatpush1.msra.mxu0 0.0
  %1133 = vmatprep.subr.mxu0 0.0
  %1134 = vmatpush1.msra.mxu0 0.0
  %1135 = vmatprep.subr.mxu0 0.0
  %1136 = vmatpush1.msra.mxu0 0.0
  %1137 = vmatprep.subr.mxu0 0.0
  %1138 = vmatpush1.msra.mxu0 0.0
  %1139 = vmatprep.subr.mxu0 0.0
  %1140 = vmatpush1.msra.mxu0 0.0
  %1141 = vmatprep.subr.mxu0 0.0
  %1142 = vmatpush1.msra.mxu0 0.0
  %1143 = vmatprep.subr.mxu0 0.0
  %1144 = vmatpush1.msra.mxu0 0.0
  %1145 = vmatprep.subr.mxu0 0.0
  %1146 = vmatpush1.msra.mxu0 0.0
  %1147 = vmatprep.subr.mxu0 0.0
  %1148 = vmatpush1.msra.mxu0 0.0
  %1149 = vmatprep.subr.mxu0 0.0
  %1150 = vmatpush1.msra.mxu0 0.0
  %1151 = vmatprep.subr.mxu0 0.0
  %1152 = vmatpush1.msra.mxu0 0.0
  %1153 = vmatprep.subr.mxu0 0.0
  %1154 = vmatpush1.msra.mxu0 0.0
  %1155 = vmatprep.subr.mxu0 0.0
  %1156 = vmatpush1.msra.mxu0 0.0
  %1157 = vmatprep.subr.mxu0 0.0
  %1158 = vmatpush1.msra.mxu0 0.0
  %1159 = vmatprep.subr.mxu0 0.0
  %1160 = vmatpush1.msra.mxu0 0.0
  %1161 = vmatprep.subr.mxu0 0.0
  %1162 = vmatpush1.msra.mxu0 0.0
  %1163 = vmatprep.subr.mxu0 0.0
  %1164 = vmatpush1.msra.mxu0 0.0
  %1165 = vmatprep.subr.mxu0 0.0
  %1166 = vmatpush1.msra.mxu0 0.0
  %1167 = vmatprep.mubr.f32.mxu0 0.0
  %v1168 = vand.u32 %v786, 4294901760
  %1169 = vmatmul.mubr.f32.gmra.mrb[0].mxu0 %v1168
  %v1170 = vpop.f32.mrb[0].mxu0
  %v1171 = vadd.f32 %v1094, %v1170
  %v1172 = vpop.f32.mrb[0].mxu0
  %1173 = vdwg.mxu0
  %1174 = vmatprep.subr.mxu0 0.0
  %v1175 = vand.u32 %v778, 4294901760
  %1176 = vmatpush1.msra.mxu0 %v1175
  %1177 = vmatprep.subr.mxu0 0.0
  %v1178 = vand.u32 %v779, 4294901760
  %1179 = vmatpush1.msra.mxu0 %v1178
  %1180 = vmatprep.subr.mxu0 0.0
  %1181 = vmatpush1.msra.mxu0 0.0
  %1182 = vmatprep.subr.mxu0 0.0
  %1183 = vmatpush1.msra.mxu0 0.0
  %1184 = vmatprep.subr.mxu0 0.0
  %1185 = vmatpush1.msra.mxu0 0.0
  %1186 = vmatprep.subr.mxu0 0.0
  %1187 = vmatpush1.msra.mxu0 0.0
  %1188 = vmatprep.subr.mxu0 0.0
  %1189 = vmatpush1.msra.mxu0 0.0
  %1190 = vmatprep.subr.mxu0 0.0
  %1191 = vmatpush1.msra.mxu0 0.0
  %1192 = vmatprep.subr.mxu0 0.0
  %1193 = vmatpush1.msra.mxu0 0.0
  %1194 = vmatprep.subr.mxu0 0.0
  %1195 = vmatpush1.msra.mxu0 0.0
  %1196 = vmatprep.subr.mxu0 0.0
  %1197 = vmatpush1.msra.mxu0 0.0
  %1198 = vmatprep.subr.mxu0 0.0
  %1199 = vmatpush1.msra.mxu0 0.0
  %1200 = vmatprep.subr.mxu0 0.0
  %1201 = vmatpush1.msra.mxu0 0.0
  %1202 = vmatprep.subr.mxu0 0.0
  %1203 = vmatpush1.msra.mxu0 0.0
  %1204 = vmatprep.subr.mxu0 0.0
  %1205 = vmatpush1.msra.mxu0 0.0
  %1206 = vmatprep.subr.mxu0 0.0
  %1207 = vmatpush1.msra.mxu0 0.0
  %1208 = vmatprep.subr.mxu0 0.0
  %1209 = vmatpush1.msra.mxu0 0.0
  %1210 = vmatprep.subr.mxu0 0.0
  %1211 = vmatpush1.msra.mxu0 0.0
  %1212 = vmatprep.subr.mxu0 0.0
  %1213 = vmatpush1.msra.mxu0 0.0
  %1214 = vmatprep.subr.mxu0 0.0
  %1215 = vmatpush1.msra.mxu0 0.0
  %1216 = vmatprep.subr.mxu0 0.0
  %1217 = vmatpush1.msra.mxu0 0.0
  %1218 = vmatprep.subr.mxu0 0.0
  %1219 = vmatpush1.msra.mxu0 0.0
  %1220 = vmatprep.subr.mxu0 0.0
  %1221 = vmatpush1.msra.mxu0 0.0
  %1222 = vmatprep.subr.mxu0 0.0
  %1223 = vmatpush1.msra.mxu0 0.0
  %1224 = vmatprep.subr.mxu0 0.0
  %1225 = vmatpush1.msra.mxu0 0.0
  %1226 = vmatprep.subr.mxu0 0.0
  %1227 = vmatpush1.msra.mxu0 0.0
  %1228 = vmatprep.subr.mxu0 0.0
  %1229 = vmatpush1.msra.mxu0 0.0
  %1230 = vmatprep.subr.mxu0 0.0
  %1231 = vmatpush1.msra.mxu0 0.0
  %1232 = vmatprep.subr.mxu0 0.0
  %1233 = vmatpush1.msra.mxu0 0.0
  %1234 = vmatprep.subr.mxu0 0.0
  %1235 = vmatpush1.msra.mxu0 0.0
  %1236 = vmatprep.subr.mxu0 0.0
  %1237 = vmatpush1.msra.mxu0 0.0
  %1238 = vmatprep.subr.mxu0 0.0
  %1239 = vmatpush1.msra.mxu0 0.0
  %1240 = vmatprep.mubr.f32.mxu0 0.0
  %v1241 = vand.u32 %v786, 4294901760
  %1242 = vmatmul.mubr.f32.gmra.mrb[0].mxu0 %v1241
  %v1243 = vpop.f32.mrb[0].mxu0
  %v1244 = vadd.f32 %v1171, %v1243
  %v1245 = vpop.f32.mrb[0].mxu0
  %1246 = vdwg.mxu0
  %v1247 = vmax.f32 %v1244, 0.0
  %1249 = vset.pattern.permute.xlu0 32
  %1250 = vperm.xlu0 %1249, %v14
  %v1251 = vpop.permute.xlu0 %1250
  %v1253 = vsel %vm41, %v14, 0
  %1255 = vmatprep.subr.mxu0 0.0
  %v1256 = vand.u32 %v1247, 4294901760
  %1257 = vmatpush1.msra.mxu0 %v1256
  %1258 = vmatprep.subr.mxu0 0.0
  %1259 = vmatpush1.msra.mxu0 0.0
  %1260 = vmatprep.subr.mxu0 0.0
  %1261 = vmatpush1.msra.mxu0 0.0
  %1262 = vmatprep.subr.mxu0 0.0
  %1263 = vmatpush1.msra.mxu0 0.0
  %1264 = vmatprep.subr.mxu0 0.0
  %1265 = vmatpush1.msra.mxu0 0.0
  %1266 = vmatprep.subr.mxu0 0.0
  %1267 = vmatpush1.msra.mxu0 0.0
  %1268 = vmatprep.subr.mxu0 0.0
  %1269 = vmatpush1.msra.mxu0 0.0
  %1270 = vmatprep.subr.mxu0 0.0
  %1271 = vmatpush1.msra.mxu0 0.0
  %1272 = vmatprep.subr.mxu0 0.0
  %1273 = vmatpush1.msra.mxu0 0.0
  %1274 = vmatprep.subr.mxu0 0.0
  %1275 = vmatpush1.msra.mxu0 0.0
  %1276 = vmatprep.subr.mxu0 0.0
  %1277 = vmatpush1.msra.mxu0 0.0
  %1278 = vmatprep.subr.mxu0 0.0
  %1279 = vmatpush1.msra.mxu0 0.0
  %1280 = vmatprep.subr.mxu0 0.0
  %1281 = vmatpush1.msra.mxu0 0.0
  %1282 = vmatprep.subr.mxu0 0.0
  %1283 = vmatpush1.msra.mxu0 0.0
  %1284 = vmatprep.subr.mxu0 0.0
  %1285 = vmatpush1.msra.mxu0 0.0
  %1286 = vmatprep.subr.mxu0 0.0
  %1287 = vmatpush1.msra.mxu0 0.0
  %1288 = vmatprep.subr.mxu0 0.0
  %1289 = vmatpush1.msra.mxu0 0.0
  %1290 = vmatprep.subr.mxu0 0.0
  %1291 = vmatpush1.msra.mxu0 0.0
  %1292 = vmatprep.subr.mxu0 0.0
  %1293 = vmatpush1.msra.mxu0 0.0
  %1294 = vmatprep.subr.mxu0 0.0
  %1295 = vmatpush1.msra.mxu0 0.0
  %1296 = vmatprep.subr.mxu0 0.0
  %1297 = vmatpush1.msra.mxu0 0.0
  %1298 = vmatprep.subr.mxu0 0.0
  %1299 = vmatpush1.msra.mxu0 0.0
  %1300 = vmatprep.subr.mxu0 0.0
  %1301 = vmatpush1.msra.mxu0 0.0
  %1302 = vmatprep.subr.mxu0 0.0
  %1303 = vmatpush1.msra.mxu0 0.0
  %1304 = vmatprep.subr.mxu0 0.0
  %1305 = vmatpush1.msra.mxu0 0.0
  %1306 = vmatprep.subr.mxu0 0.0
  %1307 = vmatpush1.msra.mxu0 0.0
  %1308 = vmatprep.subr.mxu0 0.0
  %1309 = vmatpush1.msra.mxu0 0.0
  %1310 = vmatprep.subr.mxu0 0.0
  %1311 = vmatpush1.msra.mxu0 0.0
  %1312 = vmatprep.subr.mxu0 0.0
  %1313 = vmatpush1.msra.mxu0 0.0
  %1314 = vmatprep.subr.mxu0 0.0
  %1315 = vmatpush1.msra.mxu0 0.0
  %1316 = vmatprep.subr.mxu0 0.0
  %1317 = vmatpush1.msra.mxu0 0.0
  %1318 = vmatprep.subr.mxu0 0.0
  %1319 = vmatpush1.msra.mxu0 0.0
  %1320 = vmatprep.mubr.f32.mxu0 0.0
  %v1321 = vand.u32 %v1253, 4294901760
  %v1322 = vsub.f32 %v1253, %v1321
  %v1323 = vand.u32 %v1322, 4294901760
  %v1324 = vsub.f32 %v1322, %v1323
  %v1325 = vand.u32 %v1324, 4294901760
  %1326 = vmatmul.mubr.f32.gmra.mrb[0].mxu0 %v1325
  %v1327 = vpop.f32.mrb[0].mxu0
  %v1328 = vadd.f32 %v1251, %v1327
  %v1329 = vpop.f32.mrb[0].mxu0
  %1330 = vdwg.mxu0
  %1331 = vmatprep.subr.mxu0 0.0
  %v1332 = vand.u32 %v1247, 4294901760
  %v1333 = vsub.f32 %v1247, %v1332
  %v1334 = vand.u32 %v1333, 4294901760
  %v1335 = vsub.f32 %v1333, %v1334
  %v1336 = vand.u32 %v1335, 4294901760
  %1337 = vmatpush1.msra.mxu0 %v1336
  %1338 = vmatprep.subr.mxu0 0.0
  %1339 = vmatpush1.msra.mxu0 0.0
  %1340 = vmatprep.subr.mxu0 0.0
  %1341 = vmatpush1.msra.mxu0 0.0
  %1342 = vmatprep.subr.mxu0 0.0
  %1343 = vmatpush1.msra.mxu0 0.0
  %1344 = vmatprep.subr.mxu0 0.0
  %1345 = vmatpush1.msra.mxu0 0.0
  %1346 = vmatprep.subr.mxu0 0.0
  %1347 = vmatpush1.msra.mxu0 0.0
  %1348 = vmatprep.subr.mxu0 0.0
  %1349 = vmatpush1.msra.mxu0 0.0
  %1350 = vmatprep.subr.mxu0 0.0
  %1351 = vmatpush1.msra.mxu0 0.0
  %1352 = vmatprep.subr.mxu0 0.0
  %1353 = vmatpush1.msra.mxu0 0.0
  %1354 = vmatprep.subr.mxu0 0.0
  %1355 = vmatpush1.msra.mxu0 0.0
  %1356 = vmatprep.subr.mxu0 0.0
  %1357 = vmatpush1.msra.mxu0 0.0
  %1358 = vmatprep.subr.mxu0 0.0
  %1359 = vmatpush1.msra.mxu0 0.0
  %1360 = vmatprep.subr.mxu0 0.0
  %1361 = vmatpush1.msra.mxu0 0.0
  %1362 = vmatprep.subr.mxu0 0.0
  %1363 = vmatpush1.msra.mxu0 0.0
  %1364 = vmatprep.subr.mxu0 0.0
  %1365 = vmatpush1.msra.mxu0 0.0
  %1366 = vmatprep.subr.mxu0 0.0
  %1367 = vmatpush1.msra.mxu0 0.0
  %1368 = vmatprep.subr.mxu0 0.0
  %1369 = vmatpush1.msra.mxu0 0.0
  %1370 = vmatprep.subr.mxu0 0.0
  %1371 = vmatpush1.msra.mxu0 0.0
  %1372 = vmatprep.subr.mxu0 0.0
  %1373 = vmatpush1.msra.mxu0 0.0
  %1374 = vmatprep.subr.mxu0 0.0
  %1375 = vmatpush1.msra.mxu0 0.0
  %1376 = vmatprep.subr.mxu0 0.0
  %1377 = vmatpush1.msra.mxu0 0.0
  %1378 = vmatprep.subr.mxu0 0.0
  %1379 = vmatpush1.msra.mxu0 0.0
  %1380 = vmatprep.subr.mxu0 0.0
  %1381 = vmatpush1.msra.mxu0 0.0
  %1382 = vmatprep.subr.mxu0 0.0
  %1383 = vmatpush1.msra.mxu0 0.0
  %1384 = vmatprep.subr.mxu0 0.0
  %1385 = vmatpush1.msra.mxu0 0.0
  %1386 = vmatprep.subr.mxu0 0.0
  %1387 = vmatpush1.msra.mxu0 0.0
  %1388 = vmatprep.subr.mxu0 0.0
  %1389 = vmatpush1.msra.mxu0 0.0
  %1390 = vmatprep.subr.mxu0 0.0
  %1391 = vmatpush1.msra.mxu0 0.0
  %1392 = vmatprep.subr.mxu0 0.0
  %1393 = vmatpush1.msra.mxu0 0.0
  %1394 = vmatprep.subr.mxu0 0.0
  %1395 = vmatpush1.msra.mxu0 0.0
  %1396 = vmatprep.subr.mxu0 0.0
  %1397 = vmatpush1.msra.mxu0 0.0
  %1398 = vmatprep.subr.mxu0 0.0
  %1399 = vmatpush1.msra.mxu0 0.0
  %1400 = vmatprep.mubr.f32.mxu0 0.0
  %v1401 = vand.u32 %v1253, 4294901760
  %1402 = vmatmul.mubr.f32.gmra.mrb[0].mxu0 %v1401
  %v1403 = vpop.f32.mrb[0].mxu0
  %v1404 = vadd.f32 %v1328, %v1403
  %v1405 = vpop.f32.mrb[0].mxu0
  %1406 = vdwg.mxu0
  %1407 = vmatprep.subr.mxu0 0.0
  %v1408 = vand.u32 %v1247, 4294901760
  %v1409 = vsub.f32 %v1247, %v1408
  %1410 = vmatpush1.msra.mxu0 %v1409
  %1411 = vmatprep.subr.mxu0 0.0
  %1412 = vmatpush1.msra.mxu0 0.0
  %1413 = vmatprep.subr.mxu0 0.0
  %1414 = vmatpush1.msra.mxu0 0.0
  %1415 = vmatprep.subr.mxu0 0.0
  %1416 = vmatpush1.msra.mxu0 0.0
  %1417 = vmatprep.subr.mxu0 0.0
  %1418 = vmatpush1.msra.mxu0 0.0
  %1419 = vmatprep.subr.mxu0 0.0
  %1420 = vmatpush1.msra.mxu0 0.0
  %1421 = vmatprep.subr.mxu0 0.0
  %1422 = vmatpush1.msra.mxu0 0.0
  %1423 = vmatprep.subr.mxu0 0.0
  %1424 = vmatpush1.msra.mxu0 0.0
  %1425 = vmatprep.subr.mxu0 0.0
  %1426 = vmatpush1.msra.mxu0 0.0
  %1427 = vmatprep.subr.mxu0 0.0
  %1428 = vmatpush1.msra.mxu0 0.0
  %1429 = vmatprep.subr.mxu0 0.0
  %1430 = vmatpush1.msra.mxu0 0.0
  %1431 = vmatprep.subr.mxu0 0.0
  %1432 = vmatpush1.msra.mxu0 0.0
  %1433 = vmatprep.subr.mxu0 0.0
  %1434 = vmatpush1.msra.mxu0 0.0
  %1435 = vmatprep.subr.mxu0 0.0
  %1436 = vmatpush1.msra.mxu0 0.0
  %1437 = vmatprep.subr.mxu0 0.0
  %1438 = vmatpush1.msra.mxu0 0.0
  %1439 = vmatprep.subr.mxu0 0.0
  %1440 = vmatpush1.msra.mxu0 0.0
  %1441 = vmatprep.subr.mxu0 0.0
  %1442 = vmatpush1.msra.mxu0 0.0
  %1443 = vmatprep.subr.mxu0 0.0
  %1444 = vmatpush1.msra.mxu0 0.0
  %1445 = vmatprep.subr.mxu0 0.0
  %1446 = vmatpush1.msra.mxu0 0.0
  %1447 = vmatprep.subr.mxu0 0.0
  %1448 = vmatpush1.msra.mxu0 0.0
  %1449 = vmatprep.subr.mxu0 0.0
  %1450 = vmatpush1.msra.mxu0 0.0
  %1451 = vmatprep.subr.mxu0 0.0
  %1452 = vmatpush1.msra.mxu0 0.0
  %1453 = vmatprep.subr.mxu0 0.0
  %1454 = vmatpush1.msra.mxu0 0.0
  %1455 = vmatprep.subr.mxu0 0.0
  %1456 = vmatpush1.msra.mxu0 0.0
  %1457 = vmatprep.subr.mxu0 0.0
  %1458 = vmatpush1.msra.mxu0 0.0
  %1459 = vmatprep.subr.mxu0 0.0
  %1460 = vmatpush1.msra.mxu0 0.0
  %1461 = vmatprep.subr.mxu0 0.0
  %1462 = vmatpush1.msra.mxu0 0.0
  %1463 = vmatprep.subr.mxu0 0.0
  %1464 = vmatpush1.msra.mxu0 0.0
  %1465 = vmatprep.subr.mxu0 0.0
  %1466 = vmatpush1.msra.mxu0 0.0
  %1467 = vmatprep.subr.mxu0 0.0
  %1468 = vmatpush1.msra.mxu0 0.0
  %1469 = vmatprep.subr.mxu0 0.0
  %1470 = vmatpush1.msra.mxu0 0.0
  %1471 = vmatprep.subr.mxu0 0.0
  %1472 = vmatpush1.msra.mxu0 0.0
  %1473 = vmatprep.mubr.f32.mxu0 0.0
  %v1474 = vand.u32 %v1253, 4294901760
  %v1475 = vsub.f32 %v1253, %v1474
  %1476 = vmatmul.mubr.f32.gmra.mrb[0].mxu0 %v1475
  %v1477 = vpop.f32.mrb[0].mxu0
  %v1478 = vadd.f32 %v1404, %v1477
  %v1479 = vpop.f32.mrb[0].mxu0
  %1480 = vdwg.mxu0
  %1481 = vmatprep.subr.mxu0 0.0
  %v1482 = vand.u32 %v1247, 4294901760
  %1483 = vmatpush1.msra.mxu0 %v1482
  %1484 = vmatprep.subr.mxu0 0.0
  %1485 = vmatpush1.msra.mxu0 0.0
  %1486 = vmatprep.subr.mxu0 0.0
  %1487 = vmatpush1.msra.mxu0 0.0
  %1488 = vmatprep.subr.mxu0 0.0
  %1489 = vmatpush1.msra.mxu0 0.0
  %1490 = vmatprep.subr.mxu0 0.0
  %1491 = vmatpush1.msra.mxu0 0.0
  %1492 = vmatprep.subr.mxu0 0.0
  %1493 = vmatpush1.msra.mxu0 0.0
  %1494 = vmatprep.subr.mxu0 0.0
  %1495 = vmatpush1.msra.mxu0 0.0
  %1496 = vmatprep.subr.mxu0 0.0
  %1497 = vmatpush1.msra.mxu0 0.0
  %1498 = vmatprep.subr.mxu0 0.0
  %1499 = vmatpush1.msra.mxu0 0.0
  %1500 = vmatprep.subr.mxu0 0.0
  %1501 = vmatpush1.msra.mxu0 0.0
  %1502 = vmatprep.subr.mxu0 0.0
  %1503 = vmatpush1.msra.mxu0 0.0
  %1504 = vmatprep.subr.mxu0 0.0
  %1505 = vmatpush1.msra.mxu0 0.0
  %1506 = vmatprep.subr.mxu0 0.0
  %1507 = vmatpush1.msra.mxu0 0.0
  %1508 = vmatprep.subr.mxu0 0.0
  %1509 = vmatpush1.msra.mxu0 0.0
  %1510 = vmatprep.subr.mxu0 0.0
  %1511 = vmatpush1.msra.mxu0 0.0
  %1512 = vmatprep.subr.mxu0 0.0
  %1513 = vmatpush1.msra.mxu0 0.0
  %1514 = vmatprep.subr.mxu0 0.0
  %1515 = vmatpush1.msra.mxu0 0.0
  %1516 = vmatprep.subr.mxu0 0.0
  %1517 = vmatpush1.msra.mxu0 0.0
  %1518 = vmatprep.subr.mxu0 0.0
  %1519 = vmatpush1.msra.mxu0 0.0
  %1520 = vmatprep.subr.mxu0 0.0
  %1521 = vmatpush1.msra.mxu0 0.0
  %1522 = vmatprep.subr.mxu0 0.0
  %1523 = vmatpush1.msra.mxu0 0.0
  %1524 = vmatprep.subr.mxu0 0.0
  %1525 = vmatpush1.msra.mxu0 0.0
  %1526 = vmatprep.subr.mxu0 0.0
  %1527 = vmatpush1.msra.mxu0 0.0
  %1528 = vmatprep.subr.mxu0 0.0
  %1529 = vmatpush1.msra.mxu0 0.0
  %1530 = vmatprep.subr.mxu0 0.0
  %1531 = vmatpush1.msra.mxu0 0.0
  %1532 = vmatprep.subr.mxu0 0.0
  %1533 = vmatpush1.msra.mxu0 0.0
  %1534 = vmatprep.subr.mxu0 0.0
  %1535 = vmatpush1.msra.mxu0 0.0
  %1536 = vmatprep.subr.mxu0 0.0
  %1537 = vmatpush1.msra.mxu0 0.0
  %1538 = vmatprep.subr.mxu0 0.0
  %1539 = vmatpush1.msra.mxu0 0.0
  %1540 = vmatprep.subr.mxu0 0.0
  %1541 = vmatpush1.msra.mxu0 0.0
  %1542 = vmatprep.subr.mxu0 0.0
  %1543 = vmatpush1.msra.mxu0 0.0
  %1544 = vmatprep.subr.mxu0 0.0
  %1545 = vmatpush1.msra.mxu0 0.0
  %1546 = vmatprep.mubr.f32.mxu0 0.0
  %v1547 = vand.u32 %v1253, 4294901760
  %v1548 = vsub.f32 %v1253, %v1547
  %v1549 = vand.u32 %v1548, 4294901760
  %1550 = vmatmul.mubr.f32.gmra.mrb[0].mxu0 %v1549
  %v1551 = vpop.f32.mrb[0].mxu0
  %v1552 = vadd.f32 %v1478, %v1551
  %v1553 = vpop.f32.mrb[0].mxu0
  %1554 = vdwg.mxu0
  %1555 = vmatprep.subr.mxu0 0.0
  %v1556 = vand.u32 %v1247, 4294901760
  %v1557 = vsub.f32 %v1247, %v1556
  %v1558 = vand.u32 %v1557, 4294901760
  %1559 = vmatpush1.msra.mxu0 %v1558
  %1560 = vmatprep.subr.mxu0 0.0
  %1561 = vmatpush1.msra.mxu0 0.0
  %1562 = vmatprep.subr.mxu0 0.0
  %1563 = vmatpush1.msra.mxu0 0.0
  %1564 = vmatprep.subr.mxu0 0.0
  %1565 = vmatpush1.msra.mxu0 0.0
  %1566 = vmatprep.subr.mxu0 0.0
  %1567 = vmatpush1.msra.mxu0 0.0
  %1568 = vmatprep.subr.mxu0 0.0
  %1569 = vmatpush1.msra.mxu0 0.0
  %1570 = vmatprep.subr.mxu0 0.0
  %1571 = vmatpush1.msra.mxu0 0.0
  %1572 = vmatprep.subr.mxu0 0.0
  %1573 = vmatpush1.msra.mxu0 0.0
  %1574 = vmatprep.subr.mxu0 0.0
  %1575 = vmatpush1.msra.mxu0 0.0
  %1576 = vmatprep.subr.mxu0 0.0
  %1577 = vmatpush1.msra.mxu0 0.0
  %1578 = vmatprep.subr.mxu0 0.0
  %1579 = vmatpush1.msra.mxu0 0.0
  %1580 = vmatprep.subr.mxu0 0.0
  %1581 = vmatpush1.msra.mxu0 0.0
  %1582 = vmatprep.subr.mxu0 0.0
  %1583 = vmatpush1.msra.mxu0 0.0
  %1584 = vmatprep.subr.mxu0 0.0
  %1585 = vmatpush1.msra.mxu0 0.0
  %1586 = vmatprep.subr.mxu0 0.0
  %1587 = vmatpush1.msra.mxu0 0.0
  %1588 = vmatprep.subr.mxu0 0.0
  %1589 = vmatpush1.msra.mxu0 0.0
  %1590 = vmatprep.subr.mxu0 0.0
  %1591 = vmatpush1.msra.mxu0 0.0
  %1592 = vmatprep.subr.mxu0 0.0
  %1593 = vmatpush1.msra.mxu0 0.0
  %1594 = vmatprep.subr.mxu0 0.0
  %1595 = vmatpush1.msra.mxu0 0.0
  %1596 = vmatprep.subr.mxu0 0.0
  %1597 = vmatpush1.msra.mxu0 0.0
  %1598 = vmatprep.subr.mxu0 0.0
  %1599 = vmatpush1.msra.mxu0 0.0
  %1600 = vmatprep.subr.mxu0 0.0
  %1601 = vmatpush1.msra.mxu0 0.0
  %1602 = vmatprep.subr.mxu0 0.0
  %1603 = vmatpush1.msra.mxu0 0.0
  %1604 = vmatprep.subr.mxu0 0.0
  %1605 = vmatpush1.msra.mxu0 0.0
  %1606 = vmatprep.subr.mxu0 0.0
  %1607 = vmatpush1.msra.mxu0 0.0
  %1608 = vmatprep.subr.mxu0 0.0
  %1609 = vmatpush1.msra.mxu0 0.0
  %1610 = vmatprep.subr.mxu0 0.0
  %1611 = vmatpush1.msra.mxu0 0.0
  %1612 = vmatprep.subr.mxu0 0.0
  %1613 = vmatpush1.msra.mxu0 0.0
  %1614 = vmatprep.subr.mxu0 0.0
  %1615 = vmatpush1.msra.mxu0 0.0
  %1616 = vmatprep.subr.mxu0 0.0
  %1617 = vmatpush1.msra.mxu0 0.0
  %1618 = vmatprep.subr.mxu0 0.0
  %1619 = vmatpush1.msra.mxu0 0.0
  %1620 = vmatprep.subr.mxu0 0.0
  %1621 = vmatpush1.msra.mxu0 0.0
  %1622 = vmatprep.mubr.f32.mxu0 0.0
  %v1623 = vand.u32 %v1253, 4294901760
  %1624 = vmatmul.mubr.f32.gmra.mrb[0].mxu0 %v1623
  %v1625 = vpop.f32.mrb[0].mxu0
  %v1626 = vadd.f32 %v1552, %v1625
  %v1627 = vpop.f32.mrb[0].mxu0
  %1628 = vdwg.mxu0
  %1629 = vmatprep.subr.mxu0 0.0
  %v1630 = vand.u32 %v1247, 4294901760
  %1631 = vmatpush1.msra.mxu0 %v1630
  %1632 = vmatprep.subr.mxu0 0.0
  %1633 = vmatpush1.msra.mxu0 0.0
  %1634 = vmatprep.subr.mxu0 0.0
  %1635 = vmatpush1.msra.mxu0 0.0
  %1636 = vmatprep.subr.mxu0 0.0
  %1637 = vmatpush1.msra.mxu0 0.0
  %1638 = vmatprep.subr.mxu0 0.0
  %1639 = vmatpush1.msra.mxu0 0.0
  %1640 = vmatprep.subr.mxu0 0.0
  %1641 = vmatpush1.msra.mxu0 0.0
  %1642 = vmatprep.subr.mxu0 0.0
  %1643 = vmatpush1.msra.mxu0 0.0
  %1644 = vmatprep.subr.mxu0 0.0
  %1645 = vmatpush1.msra.mxu0 0.0
  %1646 = vmatprep.subr.mxu0 0.0
  %1647 = vmatpush1.msra.mxu0 0.0
  %1648 = vmatprep.subr.mxu0 0.0
  %1649 = vmatpush1.msra.mxu0 0.0
  %1650 = vmatprep.subr.mxu0 0.0
  %1651 = vmatpush1.msra.mxu0 0.0
  %1652 = vmatprep.subr.mxu0 0.0
  %1653 = vmatpush1.msra.mxu0 0.0
  %1654 = vmatprep.subr.mxu0 0.0
  %1655 = vmatpush1.msra.mxu0 0.0
  %1656 = vmatprep.subr.mxu0 0.0
  %1657 = vmatpush1.msra.mxu0 0.0
  %1658 = vmatprep.subr.mxu0 0.0
  %1659 = vmatpush1.msra.mxu0 0.0
  %1660 = vmatprep.subr.mxu0 0.0
  %1661 = vmatpush1.msra.mxu0 0.0
  %1662 = vmatprep.subr.mxu0 0.0
  %1663 = vmatpush1.msra.mxu0 0.0
  %1664 = vmatprep.subr.mxu0 0.0
  %1665 = vmatpush1.msra.mxu0 0.0
  %1666 = vmatprep.subr.mxu0 0.0
  %1667 = vmatpush1.msra.mxu0 0.0
  %1668 = vmatprep.subr.mxu0 0.0
  %1669 = vmatpush1.msra.mxu0 0.0
  %1670 = vmatprep.subr.mxu0 0.0
  %1671 = vmatpush1.msra.mxu0 0.0
  %1672 = vmatprep.subr.mxu0 0.0
  %1673 = vmatpush1.msra.mxu0 0.0
  %1674 = vmatprep.subr.mxu0 0.0
  %1675 = vmatpush1.msra.mxu0 0.0
  %1676 = vmatprep.subr.mxu0 0.0
  %1677 = vmatpush1.msra.mxu0 0.0
  %1678 = vmatprep.subr.mxu0 0.0
  %1679 = vmatpush1.msra.mxu0 0.0
  %1680 = vmatprep.subr.mxu0 0.0
  %1681 = vmatpush1.msra.mxu0 0.0
  %1682 = vmatprep.subr.mxu0 0.0
  %1683 = vmatpush1.msra.mxu0 0.0
  %1684 = vmatprep.subr.mxu0 0.0
  %1685 = vmatpush1.msra.mxu0 0.0
  %1686 = vmatprep.subr.mxu0 0.0
  %1687 = vmatpush1.msra.mxu0 0.0
  %1688 = vmatprep.subr.mxu0 0.0
  %1689 = vmatpush1.msra.mxu0 0.0
  %1690 = vmatprep.subr.mxu0 0.0
  %1691 = vmatpush1.msra.mxu0 0.0
  %1692 = vmatprep.subr.mxu0 0.0
  %1693 = vmatpush1.msra.mxu0 0.0
  %1694 = vmatprep.mubr.f32.mxu0 0.0
  %v1695 = vand.u32 %v1253, 4294901760
  %1696 = vmatmul.mubr.f32.gmra.mrb[0].mxu0 %v1695
  %v1697 = vpop.f32.mrb[0].mxu0
  %v1698 = vadd.f32 %v1626, %v1697
  %v1699 = vpop.f32.mrb[0].mxu0
  %1700 = vdwg.mxu0
  %1701 = vxpose.xlu0.b32.start [1/16] %v1698, 128
  %1702 = vxpose.xlu0.b32.cont [2/16] 0.0, 128
  %1703 = vxpose.xlu0.b32.cont [3/16] 0.0, 128
  %1704 = vxpose.xlu0.b32.cont [4/16] 0.0, 128
  %1705 = vxpose.xlu0.b32.cont [5/16] 0.0, 128
  %1706 = vxpose.xlu0.b32.cont [6/16] 0.0, 128
  %1707 = vxpose.xlu0.b32.cont [7/16] 0.0, 128
  %1708 = vxpose.xlu0.b32.cont [8/16] 0.0, 128
  %1709 = vxpose.xlu0.b32.cont [9/16] 0.0, 128
  %1710 = vxpose.xlu0.b32.cont [10/16] 0.0, 128
  %1711 = vxpose.xlu0.b32.cont [11/16] 0.0, 128
  %1712 = vxpose.xlu0.b32.cont [12/16] 0.0, 128
  %1713 = vxpose.xlu0.b32.cont [13/16] 0.0, 128
  %1714 = vxpose.xlu0.b32.cont [14/16] 0.0, 128
  %1715 = vxpose.xlu0.b32.cont [15/16] 0.0, 128
  %1716 = vxpose.xlu0.b32.end [16/16] 0.0, 128
  %v1717 = vpop.trf.xlu0
  %v1718 = vpop.trf.xlu0
  %v1719 = vpop.trf.xlu0
  %v1720 = vpop.trf.xlu0
  %v1721 = vpop.trf.xlu0
  %v1722 = vpop.trf.xlu0
  %v1723 = vpop.trf.xlu0
  %v1724 = vpop.trf.xlu0
  %v1725 = vpop.trf.xlu0
  %v1726 = vpop.trf.xlu0
  %v1727 = vpop.trf.xlu0
  %v1728 = vpop.trf.xlu0
  %v1729 = vpop.trf.xlu0
  %v1730 = vpop.trf.xlu0
  %v1731 = vpop.trf.xlu0
  %v1732 = vpop.trf.xlu0
  %vm1733 = vcmask 31744
  %1734 = vst.msk [vmem:[%s2] sm:$0xff] %vm1733, %v1717
  %1735 = vst.msk [vmem:[%s2 + $0x8] sm:$0xff] %vm1733, %v1718
  %1736 = vst.msk [vmem:[%s2 + $0x10] sm:$0xff] %vm1733, %v1719
  %1737 = vst.msk [vmem:[%s2 + $0x18] sm:$0xff] %vm1733, %v1720
  %1738 = vst.msk [vmem:[%s2 + $0x20] sm:$0xff] %vm1733, %v1721
  %1739 = vst.msk [vmem:[%s2 + $0x28] sm:$0xff] %vm1733, %v1722
  %1740 = vst.msk [vmem:[%s2 + $0x30] sm:$0xff] %vm1733, %v1723
  %1741 = vst.msk [vmem:[%s2 + $0x38] sm:$0xff] %vm1733, %v1724
  %1742 = vst.msk [vmem:[%s2 + $0x40] sm:$0xff] %vm1733, %v1725
  %1743 = vst.msk [vmem:[%s2 + $0x48] sm:$0xff] %vm1733, %v1726
  %1744 = vst.msk [vmem:[%s2 + $0x50] sm:$0xff] %vm1733, %v1727
  %1745 = vst.msk [vmem:[%s2 + $0x58] sm:$0xff] %vm1733, %v1728
  %1746 = vst.msk [vmem:[%s2 + $0x60] sm:$0xff] %vm1733, %v1729
  %1747 = vst.msk [vmem:[%s2 + $0x68] sm:$0xff] %vm1733, %v1730
  %1748 = vst.msk [vmem:[%s2 + $0x70] sm:$0xff] %vm1733, %v1731
  %1749 = vst.msk [vmem:[%s2 + $0x78] sm:$0xff] %vm1733, %v1732
  // Predicated region
  $region10: #{net_forward.1} parent=0 // pred_check
    _
  $region11: #{net_forward.1} parent=0 // pred_check_branch
    %1751 = sbr.rel (0) target = $region13
  $region12: #{net_forward.1} parent=0 // pred_region
    _
  $region13: #{net_forward.1} parent=0 // pred_fallthru
    _
  // Predicated region
  $region14: #{net_forward.1} parent=0 // pred_check
    _
  $region15: #{net_forward.1} parent=0 // pred_check_branch
    %1753 = sbr.rel (0) target = $region17
  $region16: #{net_forward.1} parent=0 // pred_region
    _
  $region17: #{net_forward.1} parent=0 // pred_fallthru
    _

</llo_original>
